<compile_context>
chip_gen: v7x
topology: tpu7x:2x2x1
jax: 0.10.0
libtpu: 0.0.40
codegen_flags: <defaults>
</compile_context>

<pallas_src>
import functools

import jax
import jax.numpy as jnp
from jax.experimental import pallas as pl
from jax.experimental.pallas import tpu as pltpu


# --------------------------------------------------------------------------
# Hardware-aware helpers
# --------------------------------------------------------------------------
def _largest_tile(n, cap):
    """Largest divisor of n that is <= cap (guarantees exact grid division)."""
    best = 1
    for t in range(1, min(cap, n) + 1):
        if n % t == 0:
            best = t
    return best


@functools.lru_cache(maxsize=None)
def _vmem_limit_bytes():
    """Generation-aware VMEM cap: ~48 MiB on v7x (64 MiB), ~100 MiB on v5e/v6e."""
    try:
        info = pltpu.get_tpu_info()
        cap = int(getattr(info, "vmem_capacity_bytes", 0))
        if cap > 0:
            return min(cap - 16 * 1024 * 1024, 100 * 1024 * 1024)
    except Exception:
        pass
    return 48 * 1024 * 1024


@functools.lru_cache(maxsize=None)
def _mxu_m_target():
    """Target M (=TR*W) for the direct conv: 128 on v5e (4x128^2 MXU), else 256."""
    try:
        kind = jax.devices()[0].device_kind.lower()
        if "v5 lite" in kind or "v5e" in kind or "v5lite" in kind:
            return 128
    except Exception:
        pass
    return 256


# --------------------------------------------------------------------------
# Pallas kernels
# --------------------------------------------------------------------------
def _conv_tile_kernel(x_ref, w_ref, b_ref, *out_refs, TR, W, capture_pre):
    """Direct 3x3 conv for TR output rows.

    x_ref : (1, H+2, W+2, Cin) bf16 -- whole padded image, resident across row tiles.
    w_ref : (9, Cin, Cout) bf16 (tap-major).
    b_ref : (1, Cout) f32.
    Outputs: [pre f32 (optional)] + post-ReLU bf16, each (1, TR, W, Cout).
    """
    r = pl.program_id(1)
    r0 = pl.multiple_of(r * TR, TR)
    cout = w_ref.shape[-1]
    cin = w_ref.shape[-2]

    acc = jnp.zeros((TR * W, cout), jnp.float32)
    for ky in range(3):
        rows = x_ref[0, pl.ds(r0 + ky, TR), :, :]          # (TR, W+2, Cin) bf16
        for kx in range(3):
            patch = rows[:, kx:kx + W, :].reshape(TR * W, cin)
            acc += jnp.dot(patch, w_ref[ky * 3 + kx],
                           preferred_element_type=jnp.float32)

    y = acc + b_ref[...]                                   # (TR*W, Cout) f32
    post = jnp.maximum(y, 0.0).reshape(TR, W, cout)
    if capture_pre:
        pre_ref, post_ref = out_refs
        pre_ref[0] = y.reshape(TR, W, cout).astype(pre_ref.dtype)
    else:
        (post_ref,) = out_refs
    post_ref[0] = post.astype(post_ref.dtype)


def _im2col_kernel(p_ref, w_ref, b_ref, *rest, capture_pre):
    """K-tiled (TP x TK) @ (TK x Cout) with f32 accumulator, fused bias + ReLU."""
    if capture_pre:
        pre_ref, post_ref, acc_ref = rest
    else:
        post_ref, acc_ref = rest
        pre_ref = None
    k = pl.program_id(1)

    @pl.when(k == 0)
    def _():
        acc_ref[...] = jnp.zeros_like(acc_ref)

    acc_ref[...] += jnp.dot(p_ref[...], w_ref[...],
                            preferred_element_type=jnp.float32)

    @pl.when(k == pl.num_programs(1) - 1)
    def _():
        y = acc_ref[...] + b_ref[...]
        if pre_ref is not None:
            pre_ref[...] = y.astype(pre_ref.dtype)
        post_ref[...] = jnp.maximum(y, 0.0).astype(post_ref.dtype)


def _maxpool_kernel(x_ref, o_ref, *, C, TR):
    """2x2/2 max pool.  Input block (1, 2*TR, Wo, 2C): horizontal pair on lanes."""
    x = x_ref[0]                                 # (2*TR, Wo, 2C)
    m = jnp.maximum(x[..., :C], x[..., C:])      # horizontal max -> (2*TR, Wo, C)
    wo = m.shape[1]
    mr = m.reshape(TR, 2, wo, C)                 # leading-dim split (layout free)
    o_ref[0] = jnp.maximum(mr[:, 0], mr[:, 1])   # vertical max -> (TR, Wo, C)


# --------------------------------------------------------------------------
# Cached pallas_call builders (one compile per distinct shape/config)
# --------------------------------------------------------------------------
@functools.lru_cache(maxsize=None)
def _make_direct_conv_call(N, H, W, Cin, Cout, capture_pre):
    Hp, Wp = H + 2, W + 2
    TR = _largest_tile(H, max(1, _mxu_m_target() // W))

    kernel = functools.partial(_conv_tile_kernel, TR=TR, W=W,
                               capture_pre=capture_pre)

    out_shapes = []
    out_specs = []
    if capture_pre:
        out_shapes.append(jax.ShapeDtypeStruct((N, H, W, Cout), jnp.float32))
        out_specs.append(pl.BlockSpec((1, TR, W, Cout),
                                      lambda n, r: (n, r, 0, 0)))
    out_shapes.append(jax.ShapeDtypeStruct((N, H, W, Cout), jnp.bfloat16))
    out_specs.append(pl.BlockSpec((1, TR, W, Cout), lambda n, r: (n, r, 0, 0)))

    flops = 2 * N * H * W * Cin * Cout * 9
    bytes_accessed = (
        N * Hp * Wp * Cin * 2          # padded input, read once per image
        + 9 * Cin * Cout * 2           # bf16 weights
        + Cout * 4                     # f32 bias
        + N * H * W * Cout * 2         # bf16 post-ReLU output
        + (N * H * W * Cout * 4 if capture_pre else 0)   # f32 pre-act capture
    )

    return pl.pallas_call(
        kernel,
        out_shape=tuple(out_shapes) if capture_pre else out_shapes[0],
        grid=(N, H // TR),
        in_specs=[
            # Whole padded image, resident across the row-tile sweep (index map
            # constant along r) -> each activation byte is DMA'd exactly once.
            pl.BlockSpec((1, Hp, Wp, Cin), lambda n, r: (n, 0, 0, 0)),
            pl.BlockSpec((9, Cin, Cout), lambda n, r: (0, 0, 0)),
            pl.BlockSpec((1, Cout), lambda n, r: (0, 0)),
        ],
        out_specs=tuple(out_specs) if capture_pre else out_specs[0],
        compiler_params=pltpu.CompilerParams(
            dimension_semantics=("parallel", "parallel"),
            vmem_limit_bytes=_vmem_limit_bytes(),
        ),
        cost_estimate=pl.CostEstimate(
            flops=flops, transcendentals=0, bytes_accessed=bytes_accessed
        ),
    )


@functools.lru_cache(maxsize=None)
def _make_im2col_conv_call(P, K, Cout, capture_pre):
    TP = _largest_tile(P, 512)
    # K tile: largest divisor of K that is a multiple of 128 and <= 1024,
    # else fall back to the full K (e.g. K=27 for the Cin=3 first conv).
    TK = K
    for t in range(min(K, 1024), 0, -1):
        if K % t == 0 and t % 128 == 0:
            TK = t
            break

    kernel = functools.partial(_im2col_kernel, capture_pre=capture_pre)

    out_shapes = []
    out_specs = []
    if capture_pre:
        out_shapes.append(jax.ShapeDtypeStruct((P, Cout), jnp.float32))
        out_specs.append(pl.BlockSpec((TP, Cout), lambda i, k: (i, 0)))
    out_shapes.append(jax.ShapeDtypeStruct((P, Cout), jnp.bfloat16))
    out_specs.append(pl.BlockSpec((TP, Cout), lambda i, k: (i, 0)))

    bytes_accessed = (P * K * 2 + K * Cout * 2 + Cout * 4 + P * Cout * 2
                      + (P * Cout * 4 if capture_pre else 0))

    return pl.pallas_call(
        kernel,
        out_shape=tuple(out_shapes) if capture_pre else out_shapes[0],
        grid=(P // TP, K // TK),
        in_specs=[
            pl.BlockSpec((TP, TK), lambda i, k: (i, k)),
            pl.BlockSpec((TK, Cout), lambda i, k: (k, 0)),
            pl.BlockSpec((1, Cout), lambda i, k: (0, 0)),
        ],
        out_specs=tuple(out_specs) if capture_pre else out_specs[0],
        scratch_shapes=[pltpu.VMEM((TP, Cout), jnp.float32)],
        compiler_params=pltpu.CompilerParams(
            dimension_semantics=("parallel", "arbitrary"),
            vmem_limit_bytes=_vmem_limit_bytes(),
        ),
        cost_estimate=pl.CostEstimate(
            flops=2 * P * K * Cout, transcendentals=0,
            bytes_accessed=bytes_accessed,
        ),
    )


@functools.lru_cache(maxsize=None)
def _make_pool_call(N, H, Wo, C):
    Ho = H // 2
    TR = _largest_tile(Ho, 32)
    kernel = functools.partial(_maxpool_kernel, C=C, TR=TR)
    return pl.pallas_call(
        kernel,
        out_shape=jax.ShapeDtypeStruct((N, Ho, Wo, C), jnp.bfloat16),
        grid=(N, Ho // TR),
        in_specs=[
            pl.BlockSpec((1, 2 * TR, Wo, 2 * C), lambda n, r: (n, r, 0, 0))
        ],
        out_specs=pl.BlockSpec((1, TR, Wo, C), lambda n, r: (n, r, 0, 0)),
        compiler_params=pltpu.CompilerParams(
            dimension_semantics=("parallel", "parallel")
        ),
    )


# --------------------------------------------------------------------------
# Layer wrappers (plain-JAX glue around the kernels)
# --------------------------------------------------------------------------
def conv3x3(x, w9, b, *, capture_pre):
    """3x3 same-padding conv + bias + fused ReLU.

    x: (N,H,W,Cin) bf16 NHWC; w9: (9,Cin,Cout) bf16; b: (1,Cout) f32.
    Returns post-ReLU bf16 activation, plus the f32 pre-activation if
    capture_pre (matching PyTorch's conv-layer output that gets captured).
    """
    N, H, W, Cin = x.shape
    Cout = w9.shape[-1]
    xp = jnp.pad(x, ((0, 0), (1, 1), (1, 1), (0, 0)))

    use_direct = (
        Cin >= 8 and H * W >= 64 and W % 8 == 0
        and (H + 2) * (W + 2) * Cin * 2 <= 8 * 1024 * 1024   # whole image in VMEM
    )
    if use_direct:
        call = _make_direct_conv_call(N, H, W, Cin, Cout, bool(capture_pre))
        out = call(xp, w9, b)
        if capture_pre:
            pre, post = out
            return pre, post
        return out

    # Small-spatial / first layer: pack all 9 taps along K, tile K on a grid axis.
    P = N * H * W
    K = 9 * Cin
    cols = [xp[:, ky:ky + H, kx:kx + W, :] for ky in range(3) for kx in range(3)]
    patches = jnp.concatenate(cols, axis=-1).reshape(P, K)
    wk = w9.reshape(K, Cout)
    out = _make_im2col_conv_call(P, K, Cout, bool(capture_pre))(patches, wk, b)
    if capture_pre:
        pre, post = out
        return pre.reshape(N, H, W, Cout), post.reshape(N, H, W, Cout)
    return out.reshape(N, H, W, Cout)


def maxpool2x2(x):
    N, H, W, C = x.shape
    Ho, Wo = H // 2, W // 2
    xr = x.reshape(N, H, Wo, 2 * C)   # free row-major reshape: W-pair onto lanes
    return _make_pool_call(N, H, Wo, C)(xr)


# --------------------------------------------------------------------------
# VGG19 features
# --------------------------------------------------------------------------
_VGG19_CFG = [64, 64, 'M', 128, 128, 'M', 256, 256, 256, 256, 'M',
              512, 512, 512, 512, 'M', 512, 512, 512, 512, 'M']


def _build_vgg19_features(key):
    """List of (name, kind, params) mirroring torchvision vgg19().features indices."""
    layers = []
    in_c = 3
    idx = 0
    for v in _VGG19_CFG:
        if v == 'M':
            layers.append((str(idx), 'pool', None))
            idx += 1
        else:
            kw = jax.random.fold_in(key, idx)
            kb = jax.random.fold_in(key, 1000 + idx)
            fan_in = 9 * in_c
            w = jax.random.normal(kw, (3, 3, in_c, v), jnp.float32) * jnp.sqrt(
                2.0 / fan_in
            )
            b = 0.01 * jax.random.normal(kb, (v,), jnp.float32)
            w9 = w.reshape(9, in_c, v).astype(jnp.bfloat16)   # tap-major weights
            b2 = b.reshape(1, v)                              # f32 bias
            layers.append((str(idx), 'conv', (w9, b2)))
            idx += 1
            layers.append((str(idx), 'relu', None))
            idx += 1
            in_c = v
    return layers


class VGG:
    """JAX/Pallas equivalent of the PyTorch VGG wrapper (frozen features)."""

    def __init__(self, content_layers, style_layers):
        self.layers = _build_vgg19_features(jax.random.PRNGKey(1))
        self.content_layers = content_layers.keys()
        self.style_layers = style_layers.keys()

    def _captured(self, name):
        return name in self.content_layers or name in self.style_layers

    def forward(self, x_nchw):
        # NCHW (PyTorch convention) -> NHWC bf16 for the kernels.
        x = jnp.transpose(x_nchw, (0, 2, 3, 1)).astype(jnp.bfloat16)
        content_features = {}
        style_features = {}

        def capture(name, val):
            if not self._captured(name):
                return
            feat = jnp.transpose(val, (0, 3, 1, 2)).astype(jnp.float32)  # NCHW
            if name in self.content_layers:
                content_features[name] = feat
            if name in self.style_layers:
                style_features[name] = feat

        L = self.layers
        i = 0
        while i < len(L):
            name, kind, params = L[i]
            if kind == 'conv':
                if not (i + 1 < len(L) and L[i + 1][1] == 'relu'):
                    # TODO(synk): VGG19 always has ReLU after conv; a bare conv
                    # would need a no-ReLU kernel variant.
                    raise NotImplementedError("conv without following ReLU")
                relu_name = L[i + 1][0]
                need_pre = self._captured(name)
                if need_pre:
                    pre, x = conv3x3(x, *params, capture_pre=True)
                    capture(name, pre)            # pre-activation conv output
                else:
                    x = conv3x3(x, *params, capture_pre=False)
                capture(relu_name, x)             # post-ReLU output (fused)
                i += 2
            elif kind == 'pool':
                x = maxpool2x2(x)
                capture(name, x)
                i += 1
            else:  # standalone relu never reached (always fused with its conv)
                x = jnp.maximum(x, 0)
                capture(name, x)
                i += 1
        return content_features, style_features

    __call__ = forward


# --------------------------------------------------------------------------
if __name__ == "__main__":
    # Typical neural-style-transfer layer choices (indices into vgg19.features).
    content_layers = {'21': 1.0}                                   # conv4_2
    style_layers = {'0': 1.0, '5': 1.0, '10': 1.0, '19': 1.0, '28': 1.0}

    model = VGG(content_layers, style_layers)

    # Small deterministic NCHW input: batch=2, channels=3, spatial=32x32.
    x = jax.random.normal(jax.random.PRNGKey(0), (2, 3, 32, 32), jnp.float32)

    content, style = model(x)
    jax.block_until_ready((content, style))

    # Shape sanity checks (NCHW, matching PyTorch semantics).
    assert content['21'].shape == (2, 512, 4, 4)
    assert style['0'].shape == (2, 64, 32, 32)
    assert style['5'].shape == (2, 128, 16, 16)
    assert style['10'].shape == (2, 256, 8, 8)
    assert style['19'].shape == (2, 512, 4, 4)
    assert style['28'].shape == (2, 512, 2, 2)

    print("KERNEL_OK")
</pallas_src>

<mosaic_0001>
module attributes {stable_mosaic.version = 11 : i64} {
  func.func @_im2col_kernel(%arg0: i32, %arg1: i32, %arg2: memref<512x27xbf16, #tpu.memory_space<vmem>>, %arg3: memref<27x64xbf16, #tpu.memory_space<vmem>>, %arg4: memref<1x64xf32, #tpu.memory_space<vmem>>, %arg5: memref<512x64xf32, #tpu.memory_space<vmem>>, %arg6: memref<512x64xbf16, #tpu.memory_space<vmem>>, %arg7: memref<512x64xf32, #tpu.memory_space<vmem>>) attributes {dimension_semantics = [#tpu.dimension_semantics<parallel>, #tpu.dimension_semantics<arbitrary>], iteration_bounds = array<i64: 4, 1>, scalar_prefetch = 0 : i64, scratch_operands = 1 : i64, tpu.core_type = #tpu.core_type<tc>, window_params = [{transform_indices = @transform_0, window_bounds = array<i64: 512, 27>}, {transform_indices = @transform_1, window_bounds = array<i64: 27, 64>}, {pipeline_mode = #tpu.pipeline_mode<synchronous>, transform_indices = @transform_2, window_bounds = array<i64: 1, 64>}, {transform_indices = @transform_3, window_bounds = array<i64: 512, 64>}, {transform_indices = @transform_4, window_bounds = array<i64: 512, 64>}]} {
    %c0_i32 = arith.constant 0 : i32
    %0 = arith.cmpi eq, %arg1, %c0_i32 : i32
    %1 = arith.extui %0 : i1 to i32
    %c0_i32_0 = arith.constant 0 : i32
    %2 = arith.cmpi ne, %1, %c0_i32_0 : i32
    scf.if %2 {
      %cst_10 = arith.constant 0.000000e+00 : f32
      %12 = vector.broadcast %cst_10 : f32 to vector<512x64xf32>
      %c0_11 = arith.constant 0 : index
      %c0_12 = arith.constant 0 : index
      %13 = vector.load %arg7[%c0_11, %c0_12] : memref<512x64xf32, #tpu.memory_space<vmem>>, vector<512x64xf32>
      tpu.vector_store %arg7[%c0_11, %c0_12], %12 {strides = array<i32>} : memref<512x64xf32, #tpu.memory_space<vmem>>, vector<512x64xf32>,
    } else {
    }
    %c0 = arith.constant 0 : index
    %c0_1 = arith.constant 0 : index
    %3 = vector.load %arg7[%c0, %c0_1] : memref<512x64xf32, #tpu.memory_space<vmem>>, vector<512x64xf32>
    %c0_2 = arith.constant 0 : index
    %c0_3 = arith.constant 0 : index
    %4 = vector.load %arg2[%c0_2, %c0_3] : memref<512x27xbf16, #tpu.memory_space<vmem>>, vector<512x27xbf16>
    %c0_4 = arith.constant 0 : index
    %c0_5 = arith.constant 0 : index
    %5 = vector.load %arg3[%c0_4, %c0_5] : memref<27x64xbf16, #tpu.memory_space<vmem>>, vector<27x64xbf16>
    %cst = arith.constant dense<0.000000e+00> : vector<512x64xf32>
    %6 = tpu.matmul %4, %5, %cst {dimension_numbers = #tpu.dot_dimension_numbers<[1], [0], [0], [1], [0, 0, 1, 1], [], []>} : vector<512x27xbf16>, vector<27x64xbf16>, vector<512x64xf32> -> vector<512x64xf32>
    %7 = arith.addf %3, %6 : vector<512x64xf32>
    %c0_6 = arith.constant 0 : index
    %c0_7 = arith.constant 0 : index
    %8 = vector.load %arg7[%c0_6, %c0_7] : memref<512x64xf32, #tpu.memory_space<vmem>>, vector<512x64xf32>
    tpu.vector_store %arg7[%c0_6, %c0_7], %7 {strides = array<i32>} : memref<512x64xf32, #tpu.memory_space<vmem>>, vector<512x64xf32>,
    %c0_i32_8 = arith.constant 0 : i32
    %9 = arith.cmpi eq, %arg1, %c0_i32_8 : i32
    %10 = arith.extui %9 : i1 to i32
    %c0_i32_9 = arith.constant 0 : i32
    %11 = arith.cmpi ne, %10, %c0_i32_9 : i32
    scf.if %11 {
      %c0_10 = arith.constant 0 : index
      %c0_11 = arith.constant 0 : index
      %12 = vector.load %arg7[%c0_10, %c0_11] : memref<512x64xf32, #tpu.memory_space<vmem>>, vector<512x64xf32>
      %c0_12 = arith.constant 0 : index
      %c0_13 = arith.constant 0 : index
      %13 = vector.load %arg4[%c0_12, %c0_13] : memref<1x64xf32, #tpu.memory_space<vmem>>, vector<1x64xf32>
      %14 = vector.broadcast %13 : vector<1x64xf32> to vector<512x64xf32>
      %15 = arith.addf %12, %14 : vector<512x64xf32>
      %c0_14 = arith.constant 0 : index
      %c0_15 = arith.constant 0 : index
      %16 = vector.load %arg5[%c0_14, %c0_15] : memref<512x64xf32, #tpu.memory_space<vmem>>, vector<512x64xf32>
      tpu.vector_store %arg5[%c0_14, %c0_15], %15 {strides = array<i32>} : memref<512x64xf32, #tpu.memory_space<vmem>>, vector<512x64xf32>,
      %cst_16 = arith.constant 0.000000e+00 : f32
      %17 = vector.broadcast %cst_16 : f32 to vector<512x64xf32>
      %18 = arith.maximumf %15, %17 : vector<512x64xf32>
      %19 = arith.truncf %18 : vector<512x64xf32> to vector<512x64xbf16>
      %c0_17 = arith.constant 0 : index
      %c0_18 = arith.constant 0 : index
      %20 = vector.load %arg6[%c0_17, %c0_18] : memref<512x64xbf16, #tpu.memory_space<vmem>>, vector<512x64xbf16>
      tpu.vector_store %arg6[%c0_17, %c0_18], %19 {strides = array<i32>} : memref<512x64xbf16, #tpu.memory_space<vmem>>, vector<512x64xbf16>,
    } else {
    }
    return
  }
  func.func @transform_0(%arg0: i32, %arg1: i32) -> (i32, i32) {
    %c0_i32 = arith.constant 0 : i32
    return %arg0, %arg1 : i32, i32
  }
  func.func @transform_1(%arg0: i32, %arg1: i32) -> (i32, i32) {
    %c0_i32 = arith.constant 0 : i32
    %c0_i32_0 = arith.constant 0 : i32
    return %arg1, %c0_i32 : i32, i32
  }
  func.func @transform_2(%arg0: i32, %arg1: i32) -> (i32, i32) {
    %c0_i32 = arith.constant 0 : i32
    %c0_i32_0 = arith.constant 0 : i32
    %c0_i32_1 = arith.constant 0 : i32
    return %c0_i32, %c0_i32_0 : i32, i32
  }
  func.func @transform_3(%arg0: i32, %arg1: i32) -> (i32, i32) {
    %c0_i32 = arith.constant 0 : i32
    %c0_i32_0 = arith.constant 0 : i32
    return %arg0, %c0_i32 : i32, i32
  }
  func.func @transform_4(%arg0: i32, %arg1: i32) -> (i32, i32) {
    %c0_i32 = arith.constant 0 : i32
    %c0_i32_0 = arith.constant 0 : i32
    return %arg0, %c0_i32 : i32, i32
  }
}

</mosaic_0001>

<llo_original>
// kernel: tpu_custom_call.1
$region0: #{tpu_custom_call.1}
  #allocation0 [shape = 'u32[]', space=smem, size = 0x4, offset = 0x4, fixed_abs, tag = 'smem constant byte address 0x4 - core index']
  #allocation1 [shape = 'u32[144,128]{1,0:T(1,128)}', space=vmem, size = 0x12000, scoped, tag = 'internal scratch']
  #allocation2 [shape = 'f32[512,64]{1,0:T(8,128)}', space=vmem, size = 0x40000, scoped, tag = 'scratch operand']
  %s0 = inlined_call_operand.vmem [shape: bf16[2048,27], index: 0, kind: input, shape index: {}]
  %s1 = inlined_call_operand.vmem [shape: bf16[27,64], index: 1, kind: input, shape index: {}]
  %s2 = inlined_call_operand.vmem [shape: f32[1,64], index: 2, kind: input, shape index: {}]
  %s3 = inlined_call_operand.vmem [shape: f32[2048,64], index: 3, kind: output, shape index: {0}]
  %s4 = inlined_call_operand.vmem [shape: bf16[2048,64], index: 4, kind: output, shape index: {1}]
  %5 = xla_tuple %s3, %s4
  %s6 = sld [smem:[#allocation0]]
  $region61: #{tpu_custom_call.1} parent=0
    _
  %s8 = ssub.s32 1, %s6
  %s9 = scalar_select 0, %s8, %s6
  loop: start=0, step=1, limit=6
  $region2: #{tpu_custom_call.1} parent=0 // loop_pre_header
    _
  $region3: #{tpu_custom_call.1} parent=0 // loop_header
    %s11 = sphi 0, %s15
    %p12 = scmp.ge.s32.totalorder %s11, 6
    %s18 = sphi 0, %s30
    %s19 = sphi 0, %s26
    %s20 = sphi 0, %s18
    %s21 = sphi 0, %s19
    %s22 = sphi 0, %s20
    %s23 = sphi 0, %s21
    %s35 = sphi 0, %s37
    %s38 = sphi 0, %s35
    %s39 = sphi 0, %s38
    %s55 = sphi 0, %s39
    %s61 = sphi 0, %s63
    %s64 = sphi 0, %s61
    %s65 = sphi 0, %s64
    %s81 = sphi 0, %s65
    %s85 = sphi 0, %s85
    %s87 = sphi 0, %s85
    %s88 = sphi 0, %s87
    %s102 = sphi 0, %s88
    %s108 = sphi 0, %s110
    %s111 = sphi 0, %s108
    %s112 = sphi 0, %s111
    %s128 = sphi 0, %s112
    %s134 = sphi 0, %s136
    %s137 = sphi 0, %s134
    %s138 = sphi 0, %s137
    %s154 = sphi 0, %s138
  $region4: #{tpu_custom_call.1} parent=0 // loop_header_branch
    %14 = sbr.rel (%p12) target = $region8
  $region5: #{tpu_custom_call.1} parent=0 // loop_body
    %s16 = ssub.s32 %s11, 1
    %s17 = ssub.s32 %s11, 2
    %s24 = sadd.s32 1, %s19
    %p25 = scmp.ge.s32.totalorder %s24, 1
    %s26 = scalar_select %p25, 0, %s24
    %s27 = sadd.s32 1, %s18
    %s28 = scalar_select %p25, %s27, %s18
    %p29 = scmp.ge.s32.totalorder %s28, 4
    %s30 = scalar_select %p29, 0, %s28
    %s31 = ssub.s32 %s18, %s30
    %s32 = ssub.s32 %s19, %s26
    %s33 = sor.u32 %s31, %s32
    %p34 = scmp.eq.s32.totalorder %s33, 0
    %s36 = sadd.s32 %s35, 1
    %s37 = scalar_select %p34, %s35, %s36
    %p40 = pneg %p34
    %p41 = scmp.eq.s32.totalorder %s11, 3
    %p42 = por %p40, %p41
    %p43 = scmp.ne.s32.totalorder %s35, %s38
    %p44 = scmp.eq.s32.totalorder %s11, 0
    %p45 = por %p43, %p44
    %p46 = scmp.ne.s32.totalorder %s35, %s38
    %p47 = scmp.eq.s32.totalorder %s16, 3
    %p48 = por %p46, %p47
    %p49 = scmp.ne.s32.totalorder %s38, %s39
    %p50 = scmp.eq.s32.totalorder %s16, 0
    %p51 = por %p49, %p50
    %p52 = scmp.ne.s32.totalorder %s38, %s39
    %p53 = scmp.eq.s32.totalorder %s17, 3
    %p54 = por %p52, %p53
    %p56 = scmp.ne.s32.totalorder %s39, %s55
    %p57 = scmp.eq.s32.totalorder %s17, 0
    %p58 = por %p56, %p57
    %s59 = ssub.s32 %s19, %s26
    %p60 = scmp.eq.s32.totalorder %s59, 0
    %s62 = sadd.s32 %s61, 1
    %s63 = scalar_select %p60, %s61, %s62
    %p66 = pneg %p60
    %p67 = scmp.eq.s32.totalorder %s11, 3
    %p68 = por %p66, %p67
    %p69 = scmp.ne.s32.totalorder %s61, %s64
    %p70 = scmp.eq.s32.totalorder %s11, 0
    %p71 = por %p69, %p70
    %p72 = scmp.ne.s32.totalorder %s61, %s64
    %p73 = scmp.eq.s32.totalorder %s16, 3
    %p74 = por %p72, %p73
    %p75 = scmp.ne.s32.totalorder %s64, %s65
    %p76 = scmp.eq.s32.totalorder %s16, 0
    %p77 = por %p75, %p76
    %p78 = scmp.ne.s32.totalorder %s64, %s65
    %p79 = scmp.eq.s32.totalorder %s17, 3
    %p80 = por %p78, %p79
    %p82 = scmp.ne.s32.totalorder %s65, %s81
    %p83 = scmp.eq.s32.totalorder %s17, 0
    %p84 = por %p82, %p83
    %s86 = sadd.s32 %s85, 1
    %p89 = scmp.eq.s32.totalorder %s11, 3
    %p90 = scmp.ne.s32.totalorder %s85, %s87
    %p91 = scmp.eq.s32.totalorder %s11, 0
    %p92 = por %p90, %p91
    %p93 = scmp.ne.s32.totalorder %s85, %s87
    %p94 = scmp.eq.s32.totalorder %s16, 3
    %p95 = por %p93, %p94
    %p96 = scmp.ne.s32.totalorder %s87, %s88
    %p97 = scmp.eq.s32.totalorder %s16, 0
    %p98 = por %p96, %p97
    %p99 = scmp.ne.s32.totalorder %s87, %s88
    %p100 = scmp.eq.s32.totalorder %s17, 3
    %p101 = por %p99, %p100
    %p103 = scmp.ne.s32.totalorder %s88, %s102
    %p104 = scmp.eq.s32.totalorder %s17, 0
    %p105 = por %p103, %p104
    %s106 = ssub.s32 %s18, %s30
    %p107 = scmp.eq.s32.totalorder %s106, 0
    %s109 = sadd.s32 %s108, 1
    %s110 = scalar_select %p107, %s108, %s109
    %p113 = pneg %p107
    %p114 = scmp.eq.s32.totalorder %s11, 3
    %p115 = por %p113, %p114
    %p116 = scmp.ne.s32.totalorder %s108, %s111
    %p117 = scmp.eq.s32.totalorder %s11, 0
    %p118 = por %p116, %p117
    %p119 = scmp.ne.s32.totalorder %s108, %s111
    %p120 = scmp.eq.s32.totalorder %s16, 3
    %p121 = por %p119, %p120
    %p122 = scmp.ne.s32.totalorder %s111, %s112
    %p123 = scmp.eq.s32.totalorder %s16, 0
    %p124 = por %p122, %p123
    %p125 = scmp.ne.s32.totalorder %s111, %s112
    %p126 = scmp.eq.s32.totalorder %s17, 3
    %p127 = por %p125, %p126
    %p129 = scmp.ne.s32.totalorder %s112, %s128
    %p130 = scmp.eq.s32.totalorder %s17, 0
    %p131 = por %p129, %p130
    %s132 = ssub.s32 %s18, %s30
    %p133 = scmp.eq.s32.totalorder %s132, 0
    %s135 = sadd.s32 %s134, 1
    %s136 = scalar_select %p133, %s134, %s135
    %p139 = pneg %p133
    %p140 = scmp.eq.s32.totalorder %s11, 3
    %p141 = por %p139, %p140
    %p142 = scmp.ne.s32.totalorder %s134, %s137
    %p143 = scmp.eq.s32.totalorder %s11, 0
    %p144 = por %p142, %p143
    %p145 = scmp.ne.s32.totalorder %s134, %s137
    %p146 = scmp.eq.s32.totalorder %s16, 3
    %p147 = por %p145, %p146
    %p148 = scmp.ne.s32.totalorder %s137, %s138
    %p149 = scmp.eq.s32.totalorder %s16, 0
    %p150 = por %p148, %p149
    %p151 = scmp.ne.s32.totalorder %s137, %s138
    %p152 = scmp.eq.s32.totalorder %s17, 3
    %p153 = por %p151, %p152
    %p155 = scmp.ne.s32.totalorder %s138, %s154
    %p156 = scmp.eq.s32.totalorder %s17, 0
    %p157 = por %p155, %p156
    %p158 = scmp.le.s32.totalorder 1, %s11
    %p159 = scmp.lt.s32.totalorder %s11, 5
    %p160 = pnand %p158, %p159
    %p161 = pneg %p160
    // Predicated region
    $region9: #{tpu_custom_call.1} parent=5 // pred_check
      _
    $region10: #{tpu_custom_call.1} parent=5 // pred_check_branch
      %163 = sbr.rel (%p160) target = $region12
    $region11: #{tpu_custom_call.1} parent=5 // pred_region
      %s164 = ssub.s32 %s11, 1
      // Predicated region
      $region13: #{tpu_custom_call.1} parent=11 // pred_check
        %p165 = pneg %p77
      $region14: #{tpu_custom_call.1} parent=11 // pred_check_branch
        %167 = sbr.rel (%p165) target = $region16
      $region15: #{tpu_custom_call.1} parent=11 // pred_region
        %s168 = smul.u32 4, %s21
        %p169 = scmp.lt.s32.totalorder %s168, 3
        %s170 = scalar_select %p169, %s168, 3
        %s171 = smul.addr %s170, 4
        %s172 = scalar_lea.vmem %s1, %s171
        %s173 = smul.u32 4, %s21
      $region16: #{tpu_custom_call.1} parent=11 // pred_fallthru
        _
      // Predicated region
      $region17: #{tpu_custom_call.1} parent=11 // pred_check
        %p174 = pneg %p98
      $region18: #{tpu_custom_call.1} parent=11 // pred_check_branch
        %176 = sbr.rel (%p174) target = $region20
      $region19: #{tpu_custom_call.1} parent=11 // pred_region
        _
      $region20: #{tpu_custom_call.1} parent=11 // pred_fallthru
        _
    $region12: #{tpu_custom_call.1} parent=5 // pred_fallthru
      _
    %p177 = scmp.lt.s32.totalorder %s11, 4
    // Predicated region
    $region21: #{tpu_custom_call.1} parent=5 // pred_check
      %p178 = pneg %p177
    $region22: #{tpu_custom_call.1} parent=5 // pred_check_branch
      %180 = sbr.rel (%p178) target = $region24
    $region23: #{tpu_custom_call.1} parent=5 // pred_region
      // Predicated region
      $region25: #{tpu_custom_call.1} parent=23 // pred_check
        %p181 = pneg %p45
      $region26: #{tpu_custom_call.1} parent=23 // pred_check_branch
        %183 = sbr.rel (%p181) target = $region28
      $region27: #{tpu_custom_call.1} parent=23 // pred_region
        %s184 = smul.u32 64, %s18
        %p185 = scmp.lt.s32.totalorder %s184, 255
        %s186 = scalar_select %p185, %s184, 255
        %p187 = scmp.lt.s32.totalorder %s19, 0
        %s188 = scalar_select %p187, %s19, 0
        %s189 = sadd.s32 %s188, %s186
        %s190 = smul.addr %s189, 4
        %s191 = scalar_lea.vmem %s0, %s190
        %s192 = smul.u32 64, %s18
      $region28: #{tpu_custom_call.1} parent=23 // pred_fallthru
        _
    $region24: #{tpu_custom_call.1} parent=5 // pred_fallthru
      _
    %p193 = scmp.le.s32.totalorder 1, %s11
    %p194 = scmp.lt.s32.totalorder %s11, 5
    %p195 = pnand %p193, %p194
    %p196 = pneg %p195
    // Predicated region
    $region29: #{tpu_custom_call.1} parent=5 // pred_check
      _
    $region30: #{tpu_custom_call.1} parent=5 // pred_check_branch
      %198 = sbr.rel (%p195) target = $region32
    $region31: #{tpu_custom_call.1} parent=5 // pred_region
      %s199 = ssub.s32 %s11, 1
      %s200 = smul.u32 64, %s20
      %p201 = scmp.lt.s32.totalorder %s200, 255
      %s202 = scalar_select %p201, %s200, 255
      %p203 = scmp.lt.s32.totalorder %s21, 0
      %s204 = scalar_select %p203, %s21, 0
      %s205 = sadd.s32 %s204, %s202
      %s206 = smul.addr %s205, 4
      %s207 = scalar_lea.vmem %s0, %s206
      %p208 = pneg %p51
      %p209 = pneg %p48
      %s210 = smul.u32 4, %s21
      %p211 = scmp.lt.s32.totalorder %s210, 3
      %s212 = scalar_select %p211, %s210, 3
      %s213 = smul.addr %s212, 4
      %s214 = scalar_lea.vmem %s1, %s213
      %p215 = pneg %p77
      %p216 = pneg %p74
      %p217 = pneg %p98
      %p218 = pneg %p95
      %p219 = pneg %p124
      %p220 = pneg %p121
      %s221 = smul.u32 64, %s20
      %p222 = scmp.lt.s32.totalorder %s221, 255
      %s223 = scalar_select %p222, %s221, 255
      %s224 = smul.addr %s223, 8
      %s225 = scalar_lea.vmem %s3, %s224
      %p226 = pneg %p150
      %p227 = pneg %p147
      %s228 = smul.u32 64, %s20
      %p229 = scmp.lt.s32.totalorder %s228, 255
      %s230 = scalar_select %p229, %s228, 255
      %s231 = smul.addr %s230, 4
      %s232 = scalar_lea.vmem %s4, %s231
      %s233 = smul.u32 64, %s20
      %p234 = scmp.lt.s32.totalorder %s233, 255
      %s235 = scalar_select %p234, %s233, 255
      %p236 = scmp.lt.s32.totalorder %s21, 0
      %s237 = scalar_select %p236, %s21, 0
      %s238 = sadd.s32 %s237, %s235
      %s239 = smul.addr %s238, 4
      %s240 = scalar_lea.vmem %s0, %s239
      %s241 = smul.u32 64, %s20
      %s242 = smul.u32 4, %s21
      %p243 = scmp.lt.s32.totalorder %s242, 3
      %s244 = scalar_select %p243, %s242, 3
      %s245 = smul.addr %s244, 4
      %s246 = scalar_lea.vmem %s1, %s245
      %s247 = smul.u32 4, %s21
      %s248 = smul.u32 64, %s20
      %p249 = scmp.lt.s32.totalorder %s248, 255
      %s250 = scalar_select %p249, %s248, 255
      %s251 = smul.addr %s250, 8
      %s252 = scalar_lea.vmem %s3, %s251
      %s253 = smul.u32 64, %s20
      %s254 = smul.u32 64, %s20
      %p255 = scmp.lt.s32.totalorder %s254, 255
      %s256 = scalar_select %p255, %s254, 255
      %s257 = smul.addr %s256, 4
      %s258 = scalar_lea.vmem %s4, %s257
      %s259 = smul.u32 64, %s20
      %p261 = scmp.eq.s32.totalorder %s21, 0
      // Predicated region
      $region33: #{tpu_custom_call.1} parent=31 // pred_check
        %p262 = pneg %p261
      $region34: #{tpu_custom_call.1} parent=31 // pred_check_branch
        %264 = sbr.rel (%p262) target = $region36
      $region35: #{tpu_custom_call.1} parent=31 // pred_region
        %vm265 = vcmask 523264
        %266 = vst.msk [vmem:[#allocation2] sm:$0xff] %vm265, 0.0
        %267 = vst.msk [vmem:[#allocation2 + $0x8] sm:$0xff] %vm265, 0.0
        %268 = vst.msk [vmem:[#allocation2 + $0x10] sm:$0xff] %vm265, 0.0
        %269 = vst.msk [vmem:[#allocation2 + $0x18] sm:$0xff] %vm265, 0.0
        %270 = vst.msk [vmem:[#allocation2 + $0x20] sm:$0xff] %vm265, 0.0
        %271 = vst.msk [vmem:[#allocation2 + $0x28] sm:$0xff] %vm265, 0.0
        %272 = vst.msk [vmem:[#allocation2 + $0x30] sm:$0xff] %vm265, 0.0
        %273 = vst.msk [vmem:[#allocation2 + $0x38] sm:$0xff] %vm265, 0.0
        %274 = vst.msk [vmem:[#allocation2 + $0x40] sm:$0xff] %vm265, 0.0
        %275 = vst.msk [vmem:[#allocation2 + $0x48] sm:$0xff] %vm265, 0.0
        %276 = vst.msk [vmem:[#allocation2 + $0x50] sm:$0xff] %vm265, 0.0
        %277 = vst.msk [vmem:[#allocation2 + $0x58] sm:$0xff] %vm265, 0.0
        %278 = vst.msk [vmem:[#allocation2 + $0x60] sm:$0xff] %vm265, 0.0
        %279 = vst.msk [vmem:[#allocation2 + $0x68] sm:$0xff] %vm265, 0.0
        %280 = vst.msk [vmem:[#allocation2 + $0x70] sm:$0xff] %vm265, 0.0
        %281 = vst.msk [vmem:[#allocation2 + $0x78] sm:$0xff] %vm265, 0.0
        %282 = vst.msk [vmem:[#allocation2 + $0x80] sm:$0xff] %vm265, 0.0
        %283 = vst.msk [vmem:[#allocation2 + $0x88] sm:$0xff] %vm265, 0.0
        %284 = vst.msk [vmem:[#allocation2 + $0x90] sm:$0xff] %vm265, 0.0
        %285 = vst.msk [vmem:[#allocation2 + $0x98] sm:$0xff] %vm265, 0.0
        %286 = vst.msk [vmem:[#allocation2 + $0xa0] sm:$0xff] %vm265, 0.0
        %287 = vst.msk [vmem:[#allocation2 + $0xa8] sm:$0xff] %vm265, 0.0
        %288 = vst.msk [vmem:[#allocation2 + $0xb0] sm:$0xff] %vm265, 0.0
        %289 = vst.msk [vmem:[#allocation2 + $0xb8] sm:$0xff] %vm265, 0.0
        %290 = vst.msk [vmem:[#allocation2 + $0xc0] sm:$0xff] %vm265, 0.0
        %291 = vst.msk [vmem:[#allocation2 + $0xc8] sm:$0xff] %vm265, 0.0
        %292 = vst.msk [vmem:[#allocation2 + $0xd0] sm:$0xff] %vm265, 0.0
        %293 = vst.msk [vmem:[#allocation2 + $0xd8] sm:$0xff] %vm265, 0.0
        %294 = vst.msk [vmem:[#allocation2 + $0xe0] sm:$0xff] %vm265, 0.0
        %295 = vst.msk [vmem:[#allocation2 + $0xe8] sm:$0xff] %vm265, 0.0
        %296 = vst.msk [vmem:[#allocation2 + $0xf0] sm:$0xff] %vm265, 0.0
        %297 = vst.msk [vmem:[#allocation2 + $0xf8] sm:$0xff] %vm265, 0.0
        %298 = vst.msk [vmem:[#allocation2 + $0x100] sm:$0xff] %vm265, 0.0
        %299 = vst.msk [vmem:[#allocation2 + $0x108] sm:$0xff] %vm265, 0.0
        %300 = vst.msk [vmem:[#allocation2 + $0x110] sm:$0xff] %vm265, 0.0
        %301 = vst.msk [vmem:[#allocation2 + $0x118] sm:$0xff] %vm265, 0.0
        %302 = vst.msk [vmem:[#allocation2 + $0x120] sm:$0xff] %vm265, 0.0
        %303 = vst.msk [vmem:[#allocation2 + $0x128] sm:$0xff] %vm265, 0.0
        %304 = vst.msk [vmem:[#allocation2 + $0x130] sm:$0xff] %vm265, 0.0
        %305 = vst.msk [vmem:[#allocation2 + $0x138] sm:$0xff] %vm265, 0.0
        %306 = vst.msk [vmem:[#allocation2 + $0x140] sm:$0xff] %vm265, 0.0
        %307 = vst.msk [vmem:[#allocation2 + $0x148] sm:$0xff] %vm265, 0.0
        %308 = vst.msk [vmem:[#allocation2 + $0x150] sm:$0xff] %vm265, 0.0
        %309 = vst.msk [vmem:[#allocation2 + $0x158] sm:$0xff] %vm265, 0.0
        %310 = vst.msk [vmem:[#allocation2 + $0x160] sm:$0xff] %vm265, 0.0
        %311 = vst.msk [vmem:[#allocation2 + $0x168] sm:$0xff] %vm265, 0.0
        %312 = vst.msk [vmem:[#allocation2 + $0x170] sm:$0xff] %vm265, 0.0
        %313 = vst.msk [vmem:[#allocation2 + $0x178] sm:$0xff] %vm265, 0.0
        %314 = vst.msk [vmem:[#allocation2 + $0x180] sm:$0xff] %vm265, 0.0
        %315 = vst.msk [vmem:[#allocation2 + $0x188] sm:$0xff] %vm265, 0.0
        %316 = vst.msk [vmem:[#allocation2 + $0x190] sm:$0xff] %vm265, 0.0
        %317 = vst.msk [vmem:[#allocation2 + $0x198] sm:$0xff] %vm265, 0.0
        %318 = vst.msk [vmem:[#allocation2 + $0x1a0] sm:$0xff] %vm265, 0.0
        %319 = vst.msk [vmem:[#allocation2 + $0x1a8] sm:$0xff] %vm265, 0.0
        %320 = vst.msk [vmem:[#allocation2 + $0x1b0] sm:$0xff] %vm265, 0.0
        %321 = vst.msk [vmem:[#allocation2 + $0x1b8] sm:$0xff] %vm265, 0.0
        %322 = vst.msk [vmem:[#allocation2 + $0x1c0] sm:$0xff] %vm265, 0.0
        %323 = vst.msk [vmem:[#allocation2 + $0x1c8] sm:$0xff] %vm265, 0.0
        %324 = vst.msk [vmem:[#allocation2 + $0x1d0] sm:$0xff] %vm265, 0.0
        %325 = vst.msk [vmem:[#allocation2 + $0x1d8] sm:$0xff] %vm265, 0.0
        %326 = vst.msk [vmem:[#allocation2 + $0x1e0] sm:$0xff] %vm265, 0.0
        %327 = vst.msk [vmem:[#allocation2 + $0x1e8] sm:$0xff] %vm265, 0.0
        %328 = vst.msk [vmem:[#allocation2 + $0x1f0] sm:$0xff] %vm265, 0.0
        %329 = vst.msk [vmem:[#allocation2 + $0x1f8] sm:$0xff] %vm265, 0.0
      $region36: #{tpu_custom_call.1} parent=31 // pred_fallthru
        _
      %v330 = vld [vmem:[#allocation2] sm:$0xff]
      %v331 = vld [vmem:[#allocation2 + $0x8] sm:$0xff]
      %v332 = vld [vmem:[#allocation2 + $0x10] sm:$0xff]
      %v333 = vld [vmem:[#allocation2 + $0x18] sm:$0xff]
      %v334 = vld [vmem:[#allocation2 + $0x20] sm:$0xff]
      %v335 = vld [vmem:[#allocation2 + $0x28] sm:$0xff]
      %v336 = vld [vmem:[#allocation2 + $0x30] sm:$0xff]
      %v337 = vld [vmem:[#allocation2 + $0x38] sm:$0xff]
      %v338 = vld [vmem:[#allocation2 + $0x40] sm:$0xff]
      %v339 = vld [vmem:[#allocation2 + $0x48] sm:$0xff]
      %v340 = vld [vmem:[#allocation2 + $0x50] sm:$0xff]
      %v341 = vld [vmem:[#allocation2 + $0x58] sm:$0xff]
      %v342 = vld [vmem:[#allocation2 + $0x60] sm:$0xff]
      %v343 = vld [vmem:[#allocation2 + $0x68] sm:$0xff]
      %v344 = vld [vmem:[#allocation2 + $0x70] sm:$0xff]
      %v345 = vld [vmem:[#allocation2 + $0x78] sm:$0xff]
      %v346 = vld [vmem:[#allocation2 + $0x80] sm:$0xff]
      %v347 = vld [vmem:[#allocation2 + $0x88] sm:$0xff]
      %v348 = vld [vmem:[#allocation2 + $0x90] sm:$0xff]
      %v349 = vld [vmem:[#allocation2 + $0x98] sm:$0xff]
      %v350 = vld [vmem:[#allocation2 + $0xa0] sm:$0xff]
      %v351 = vld [vmem:[#allocation2 + $0xa8] sm:$0xff]
      %v352 = vld [vmem:[#allocation2 + $0xb0] sm:$0xff]
      %v353 = vld [vmem:[#allocation2 + $0xb8] sm:$0xff]
      %v354 = vld [vmem:[#allocation2 + $0xc0] sm:$0xff]
      %v355 = vld [vmem:[#allocation2 + $0xc8] sm:$0xff]
      %v356 = vld [vmem:[#allocation2 + $0xd0] sm:$0xff]
      %v357 = vld [vmem:[#allocation2 + $0xd8] sm:$0xff]
      %v358 = vld [vmem:[#allocation2 + $0xe0] sm:$0xff]
      %v359 = vld [vmem:[#allocation2 + $0xe8] sm:$0xff]
      %v360 = vld [vmem:[#allocation2 + $0xf0] sm:$0xff]
      %v361 = vld [vmem:[#allocation2 + $0xf8] sm:$0xff]
      %v362 = vld [vmem:[#allocation2 + $0x100] sm:$0xff]
      %v363 = vld [vmem:[#allocation2 + $0x108] sm:$0xff]
      %v364 = vld [vmem:[#allocation2 + $0x110] sm:$0xff]
      %v365 = vld [vmem:[#allocation2 + $0x118] sm:$0xff]
      %v366 = vld [vmem:[#allocation2 + $0x120] sm:$0xff]
      %v367 = vld [vmem:[#allocation2 + $0x128] sm:$0xff]
      %v368 = vld [vmem:[#allocation2 + $0x130] sm:$0xff]
      %v369 = vld [vmem:[#allocation2 + $0x138] sm:$0xff]
      %v370 = vld [vmem:[#allocation2 + $0x140] sm:$0xff]
      %v371 = vld [vmem:[#allocation2 + $0x148] sm:$0xff]
      %v372 = vld [vmem:[#allocation2 + $0x150] sm:$0xff]
      %v373 = vld [vmem:[#allocation2 + $0x158] sm:$0xff]
      %v374 = vld [vmem:[#allocation2 + $0x160] sm:$0xff]
      %v375 = vld [vmem:[#allocation2 + $0x168] sm:$0xff]
      %v376 = vld [vmem:[#allocation2 + $0x170] sm:$0xff]
      %v377 = vld [vmem:[#allocation2 + $0x178] sm:$0xff]
      %v378 = vld [vmem:[#allocation2 + $0x180] sm:$0xff]
      %v379 = vld [vmem:[#allocation2 + $0x188] sm:$0xff]
      %v380 = vld [vmem:[#allocation2 + $0x190] sm:$0xff]
      %v381 = vld [vmem:[#allocation2 + $0x198] sm:$0xff]
      %v382 = vld [vmem:[#allocation2 + $0x1a0] sm:$0xff]
      %v383 = vld [vmem:[#allocation2 + $0x1a8] sm:$0xff]
      %v384 = vld [vmem:[#allocation2 + $0x1b0] sm:$0xff]
      %v385 = vld [vmem:[#allocation2 + $0x1b8] sm:$0xff]
      %v386 = vld [vmem:[#allocation2 + $0x1c0] sm:$0xff]
      %v387 = vld [vmem:[#allocation2 + $0x1c8] sm:$0xff]
      %v388 = vld [vmem:[#allocation2 + $0x1d0] sm:$0xff]
      %v389 = vld [vmem:[#allocation2 + $0x1d8] sm:$0xff]
      %v390 = vld [vmem:[#allocation2 + $0x1e0] sm:$0xff]
      %v391 = vld [vmem:[#allocation2 + $0x1e8] sm:$0xff]
      %v392 = vld [vmem:[#allocation2 + $0x1f0] sm:$0xff]
      %v393 = vld [vmem:[#allocation2 + $0x1f8] sm:$0xff]
      %v394 = vld [vmem:[%s240] sm:$0xf]
      %v395 = vld [vmem:[%s240 + $0x4] sm:$0xf]
      %v396 = vld [vmem:[%s240 + $0x8] sm:$0xf]
      %v397 = vld [vmem:[%s240 + $0xc] sm:$0xf]
      %v398 = vld [vmem:[%s240 + $0x10] sm:$0xf]
      %v399 = vld [vmem:[%s240 + $0x14] sm:$0xf]
      %v400 = vld [vmem:[%s240 + $0x18] sm:$0xf]
      %v401 = vld [vmem:[%s240 + $0x1c] sm:$0xf]
      %v402 = vld [vmem:[%s240 + $0x20] sm:$0xf]
      %v403 = vld [vmem:[%s240 + $0x24] sm:$0xf]
      %v404 = vld [vmem:[%s240 + $0x28] sm:$0xf]
      %v405 = vld [vmem:[%s240 + $0x2c] sm:$0xf]
      %v406 = vld [vmem:[%s240 + $0x30] sm:$0xf]
      %v407 = vld [vmem:[%s240 + $0x34] sm:$0xf]
      %v408 = vld [vmem:[%s240 + $0x38] sm:$0xf]
      %v409 = vld [vmem:[%s240 + $0x3c] sm:$0xf]
      %v410 = vld [vmem:[%s240 + $0x40] sm:$0xf]
      %v411 = vld [vmem:[%s240 + $0x44] sm:$0xf]
      %v412 = vld [vmem:[%s240 + $0x48] sm:$0xf]
      %v413 = vld [vmem:[%s240 + $0x4c] sm:$0xf]
      %v414 = vld [vmem:[%s240 + $0x50] sm:$0xf]
      %v415 = vld [vmem:[%s240 + $0x54] sm:$0xf]
      %v416 = vld [vmem:[%s240 + $0x58] sm:$0xf]
      %v417 = vld [vmem:[%s240 + $0x5c] sm:$0xf]
      %v418 = vld [vmem:[%s240 + $0x60] sm:$0xf]
      %v419 = vld [vmem:[%s240 + $0x64] sm:$0xf]
      %v420 = vld [vmem:[%s240 + $0x68] sm:$0xf]
      %v421 = vld [vmem:[%s240 + $0x6c] sm:$0xf]
      %v422 = vld [vmem:[%s240 + $0x70] sm:$0xf]
      %v423 = vld [vmem:[%s240 + $0x74] sm:$0xf]
      %v424 = vld [vmem:[%s240 + $0x78] sm:$0xf]
      %v425 = vld [vmem:[%s240 + $0x7c] sm:$0xf]
      %v426 = vld [vmem:[%s240 + $0x80] sm:$0xf]
      %v427 = vld [vmem:[%s240 + $0x84] sm:$0xf]
      %v428 = vld [vmem:[%s240 + $0x88] sm:$0xf]
      %v429 = vld [vmem:[%s240 + $0x8c] sm:$0xf]
      %v430 = vld [vmem:[%s240 + $0x90] sm:$0xf]
      %v431 = vld [vmem:[%s240 + $0x94] sm:$0xf]
      %v432 = vld [vmem:[%s240 + $0x98] sm:$0xf]
      %v433 = vld [vmem:[%s240 + $0x9c] sm:$0xf]
      %v434 = vld [vmem:[%s240 + $0xa0] sm:$0xf]
      %v435 = vld [vmem:[%s240 + $0xa4] sm:$0xf]
      %v436 = vld [vmem:[%s240 + $0xa8] sm:$0xf]
      %v437 = vld [vmem:[%s240 + $0xac] sm:$0xf]
      %v438 = vld [vmem:[%s240 + $0xb0] sm:$0xf]
      %v439 = vld [vmem:[%s240 + $0xb4] sm:$0xf]
      %v440 = vld [vmem:[%s240 + $0xb8] sm:$0xf]
      %v441 = vld [vmem:[%s240 + $0xbc] sm:$0xf]
      %v442 = vld [vmem:[%s240 + $0xc0] sm:$0xf]
      %v443 = vld [vmem:[%s240 + $0xc4] sm:$0xf]
      %v444 = vld [vmem:[%s240 + $0xc8] sm:$0xf]
      %v445 = vld [vmem:[%s240 + $0xcc] sm:$0xf]
      %v446 = vld [vmem:[%s240 + $0xd0] sm:$0xf]
      %v447 = vld [vmem:[%s240 + $0xd4] sm:$0xf]
      %v448 = vld [vmem:[%s240 + $0xd8] sm:$0xf]
      %v449 = vld [vmem:[%s240 + $0xdc] sm:$0xf]
      %v450 = vld [vmem:[%s240 + $0xe0] sm:$0xf]
      %v451 = vld [vmem:[%s240 + $0xe4] sm:$0xf]
      %v452 = vld [vmem:[%s240 + $0xe8] sm:$0xf]
      %v453 = vld [vmem:[%s240 + $0xec] sm:$0xf]
      %v454 = vld [vmem:[%s240 + $0xf0] sm:$0xf]
      %v455 = vld [vmem:[%s240 + $0xf4] sm:$0xf]
      %v456 = vld [vmem:[%s240 + $0xf8] sm:$0xf]
      %v457 = vld [vmem:[%s240 + $0xfc] sm:$0xf]
      %v458 = vld [vmem:[%s246] sm:$0xf]
      %v459 = vld [vmem:[%s246 + $0x4] sm:$0xf]
      %v460 = vld [vmem:[%s246 + $0x8] sm:$0xf]
      %v461 = vld [vmem:[%s246 + $0xc] sm:$0x3]
      %v526 = vunpack.c.l.b16 %v394
      %v527 = vunpack.c.l.b16 %v395
      %v528 = vunpack.c.l.b16 %v396
      %v529 = vunpack.c.l.b16 %v397
      %v530 = vunpack.c.l.b16 %v398
      %v531 = vunpack.c.l.b16 %v399
      %v532 = vunpack.c.l.b16 %v400
      %v533 = vunpack.c.l.b16 %v401
      %v534 = vunpack.c.l.b16 %v402
      %v535 = vunpack.c.l.b16 %v403
      %v536 = vunpack.c.l.b16 %v404
      %v537 = vunpack.c.l.b16 %v405
      %v538 = vunpack.c.l.b16 %v406
      %v539 = vunpack.c.l.b16 %v407
      %v540 = vunpack.c.l.b16 %v408
      %v541 = vunpack.c.l.b16 %v409
      %v542 = vunpack.c.l.b16 %v410
      %v543 = vunpack.c.l.b16 %v411
      %v544 = vunpack.c.l.b16 %v412
      %v545 = vunpack.c.l.b16 %v413
      %v546 = vunpack.c.l.b16 %v414
      %v547 = vunpack.c.l.b16 %v415
      %v548 = vunpack.c.l.b16 %v416
      %v549 = vunpack.c.l.b16 %v417
      %v550 = vunpack.c.l.b16 %v418
      %v551 = vunpack.c.l.b16 %v419
      %v552 = vunpack.c.l.b16 %v420
      %v553 = vunpack.c.l.b16 %v421
      %v554 = vunpack.c.l.b16 %v422
      %v555 = vunpack.c.l.b16 %v423
      %v556 = vunpack.c.l.b16 %v424
      %v557 = vunpack.c.l.b16 %v425
      %v558 = vunpack.c.l.b16 %v426
      %v559 = vunpack.c.l.b16 %v427
      %v560 = vunpack.c.l.b16 %v428
      %v561 = vunpack.c.l.b16 %v429
      %v562 = vunpack.c.l.b16 %v430
      %v563 = vunpack.c.l.b16 %v431
      %v564 = vunpack.c.l.b16 %v432
      %v565 = vunpack.c.l.b16 %v433
      %v566 = vunpack.c.l.b16 %v434
      %v567 = vunpack.c.l.b16 %v435
      %v568 = vunpack.c.l.b16 %v436
      %v569 = vunpack.c.l.b16 %v437
      %v570 = vunpack.c.l.b16 %v438
      %v571 = vunpack.c.l.b16 %v439
      %v572 = vunpack.c.l.b16 %v440
      %v573 = vunpack.c.l.b16 %v441
      %v574 = vunpack.c.l.b16 %v442
      %v575 = vunpack.c.l.b16 %v443
      %v576 = vunpack.c.l.b16 %v444
      %v577 = vunpack.c.l.b16 %v445
      %v578 = vunpack.c.l.b16 %v446
      %v579 = vunpack.c.l.b16 %v447
      %v580 = vunpack.c.l.b16 %v448
      %v581 = vunpack.c.l.b16 %v449
      %v582 = vunpack.c.l.b16 %v450
      %v583 = vunpack.c.l.b16 %v451
      %v584 = vunpack.c.l.b16 %v452
      %v585 = vunpack.c.l.b16 %v453
      %v586 = vunpack.c.l.b16 %v454
      %v587 = vunpack.c.l.b16 %v455
      %v588 = vunpack.c.l.b16 %v456
      %v589 = vunpack.c.l.b16 %v457
      %v590 = vpack.c.b16 %v527, %v526
      %v591 = vpack.c.b16 %v529, %v528
      %v592 = vpack.c.b16 %v531, %v530
      %v593 = vpack.c.b16 %v533, %v532
      %v594 = vpack.c.b16 %v535, %v534
      %v595 = vpack.c.b16 %v537, %v536
      %v596 = vpack.c.b16 %v539, %v538
      %v597 = vpack.c.b16 %v541, %v540
      %v598 = vpack.c.b16 %v543, %v542
      %v599 = vpack.c.b16 %v545, %v544
      %v600 = vpack.c.b16 %v547, %v546
      %v601 = vpack.c.b16 %v549, %v548
      %v602 = vpack.c.b16 %v551, %v550
      %v603 = vpack.c.b16 %v553, %v552
      %v604 = vpack.c.b16 %v555, %v554
      %v605 = vpack.c.b16 %v557, %v556
      %v606 = vpack.c.b16 %v559, %v558
      %v607 = vpack.c.b16 %v561, %v560
      %v608 = vpack.c.b16 %v563, %v562
      %v609 = vpack.c.b16 %v565, %v564
      %v610 = vpack.c.b16 %v567, %v566
      %v611 = vpack.c.b16 %v569, %v568
      %v612 = vpack.c.b16 %v571, %v570
      %v613 = vpack.c.b16 %v573, %v572
      %v614 = vpack.c.b16 %v575, %v574
      %v615 = vpack.c.b16 %v577, %v576
      %v616 = vpack.c.b16 %v579, %v578
      %v617 = vpack.c.b16 %v581, %v580
      %v618 = vpack.c.b16 %v583, %v582
      %v619 = vpack.c.b16 %v585, %v584
      %v620 = vpack.c.b16 %v587, %v586
      %v621 = vpack.c.b16 %v589, %v588
      %v626 = vunpack.c.l.b16 %v458
      %v627 = vunpack.c.l.b16 %v459
      %v628 = vunpack.c.l.b16 %v460
      %v629 = vunpack.c.l.b16 %v461
      %v630 = vpack.c.b16 %v627, %v626
      %v631 = vpack.c.b16 %v629, %v628
      %vm633 = vcmask 220160
      %v635 = vsel %vm633, %v590, 0
      %v638 = vsel %vm633, %v591, 0
      %v641 = vsel %vm633, %v592, 0
      %v644 = vsel %vm633, %v593, 0
      %v647 = vsel %vm633, %v594, 0
      %v650 = vsel %vm633, %v595, 0
      %v653 = vsel %vm633, %v596, 0
      %v656 = vsel %vm633, %v597, 0
      %v659 = vsel %vm633, %v598, 0
      %v662 = vsel %vm633, %v599, 0
      %v665 = vsel %vm633, %v600, 0
      %v668 = vsel %vm633, %v601, 0
      %v671 = vsel %vm633, %v602, 0
      %v674 = vsel %vm633, %v603, 0
      %v677 = vsel %vm633, %v604, 0
      %v680 = vsel %vm633, %v605, 0
      %v683 = vsel %vm633, %v606, 0
      %v686 = vsel %vm633, %v607, 0
      %v689 = vsel %vm633, %v608, 0
      %v692 = vsel %vm633, %v609, 0
      %v695 = vsel %vm633, %v610, 0
      %v698 = vsel %vm633, %v611, 0
      %v701 = vsel %vm633, %v612, 0
      %v704 = vsel %vm633, %v613, 0
      %v707 = vsel %vm633, %v614, 0
      %v710 = vsel %vm633, %v615, 0
      %v713 = vsel %vm633, %v616, 0
      %v716 = vsel %vm633, %v617, 0
      %v719 = vsel %vm633, %v618, 0
      %v722 = vsel %vm633, %v619, 0
      %v725 = vsel %vm633, %v620, 0
      %v728 = vsel %vm633, %v621, 0
      %vm730 = vcmask 1044480
      %vm731 = vcmask 1045504
      %v732 = vsel %vm730, 4294967295, 65535
      %v733 = vsel %vm731, %v732, 0
      %v735 = vand.u32 %v631, %v733
      %737 = vmatprep.subr.bf16.mxu0 0
      %738 = vmatpush1.bf16.msra.mxu0 %v630
      %739 = vmatprep.subr.bf16.mxu0 0
      %740 = vmatpush1.bf16.msra.mxu0 %v735
      %741 = vmatprep.subr.bf16.mxu0 0
      %742 = vmatpush1.bf16.msra.mxu0 0
      %743 = vmatprep.subr.bf16.mxu0 0
      %744 = vmatpush1.bf16.msra.mxu0 0
      %745 = vmatprep.subr.bf16.mxu0 0
      %746 = vmatpush1.bf16.msra.mxu0 0
      %747 = vmatprep.subr.bf16.mxu0 0
      %748 = vmatpush1.bf16.msra.mxu0 0
      %749 = vmatprep.subr.bf16.mxu0 0
      %750 = vmatpush1.bf16.msra.mxu0 0
      %751 = vmatprep.subr.bf16.mxu0 0
      %752 = vmatpush1.bf16.msra.mxu0 0
      %753 = vmatprep.subr.bf16.mxu0 0
      %754 = vmatpush1.bf16.msra.mxu0 0
      %755 = vmatprep.subr.bf16.mxu0 0
      %756 = vmatpush1.bf16.msra.mxu0 0
      %757 = vmatprep.subr.bf16.mxu0 0
      %758 = vmatpush1.bf16.msra.mxu0 0
      %759 = vmatprep.subr.bf16.mxu0 0
      %760 = vmatpush1.bf16.msra.mxu0 0
      %761 = vmatprep.subr.bf16.mxu0 0
      %762 = vmatpush1.bf16.msra.mxu0 0
      %763 = vmatprep.subr.bf16.mxu0 0
      %764 = vmatpush1.bf16.msra.mxu0 0
      %765 = vmatprep.subr.bf16.mxu0 0
      %766 = vmatpush1.bf16.msra.mxu0 0
      %767 = vmatprep.subr.bf16.mxu0 0
      %768 = vmatpush1.bf16.msra.mxu0 0
      %769 = vmatprep.mubr.bf16.mxu0 0
      %770 = vmatmul.mubr.bf16.gmra.mrb[0].mxu0 %v635
      %v771 = vpop.f32.mrb[0].mxu0
      %v772 = vadd.f32 0.0, %v771
      %v773 = vpop.f32.mrb[0].mxu0
      %v774 = vpop.f32.mrb[0].mxu0
      %v775 = vadd.f32 0.0, %v774
      %v776 = vpop.f32.mrb[0].mxu0
      %777 = vmatprep.mubr.bf16.mxu0 0
      %778 = vmatmul.mubr.bf16.gmra.mrb[0].mxu0 %v638
      %v779 = vpop.f32.mrb[0].mxu0
      %v780 = vadd.f32 0.0, %v779
      %v781 = vpop.f32.mrb[0].mxu0
      %v782 = vpop.f32.mrb[0].mxu0
      %v783 = vadd.f32 0.0, %v782
      %v784 = vpop.f32.mrb[0].mxu0
      %785 = vmatprep.mubr.bf16.mxu0 0
      %786 = vmatmul.mubr.bf16.gmra.mrb[0].mxu0 %v641
      %v787 = vpop.f32.mrb[0].mxu0
      %v788 = vadd.f32 0.0, %v787
      %v789 = vpop.f32.mrb[0].mxu0
      %v790 = vpop.f32.mrb[0].mxu0
      %v791 = vadd.f32 0.0, %v790
      %v792 = vpop.f32.mrb[0].mxu0
      %793 = vmatprep.mubr.bf16.mxu0 0
      %794 = vmatmul.mubr.bf16.gmra.mrb[0].mxu0 %v644
      %v795 = vpop.f32.mrb[0].mxu0
      %v796 = vadd.f32 0.0, %v795
      %v797 = vpop.f32.mrb[0].mxu0
      %v798 = vpop.f32.mrb[0].mxu0
      %v799 = vadd.f32 0.0, %v798
      %v800 = vpop.f32.mrb[0].mxu0
      %801 = vmatprep.mubr.bf16.mxu0 0
      %802 = vmatmul.mubr.bf16.gmra.mrb[0].mxu0 %v647
      %v803 = vpop.f32.mrb[0].mxu0
      %v804 = vadd.f32 0.0, %v803
      %v805 = vpop.f32.mrb[0].mxu0
      %v806 = vpop.f32.mrb[0].mxu0
      %v807 = vadd.f32 0.0, %v806
      %v808 = vpop.f32.mrb[0].mxu0
      %809 = vmatprep.mubr.bf16.mxu0 0
      %810 = vmatmul.mubr.bf16.gmra.mrb[0].mxu0 %v650
      %v811 = vpop.f32.mrb[0].mxu0
      %v812 = vadd.f32 0.0, %v811
      %v813 = vpop.f32.mrb[0].mxu0
      %v814 = vpop.f32.mrb[0].mxu0
      %v815 = vadd.f32 0.0, %v814
      %v816 = vpop.f32.mrb[0].mxu0
      %817 = vmatprep.mubr.bf16.mxu0 0
      %818 = vmatmul.mubr.bf16.gmra.mrb[0].mxu0 %v653
      %v819 = vpop.f32.mrb[0].mxu0
      %v820 = vadd.f32 0.0, %v819
      %v821 = vpop.f32.mrb[0].mxu0
      %v822 = vpop.f32.mrb[0].mxu0
      %v823 = vadd.f32 0.0, %v822
      %v824 = vpop.f32.mrb[0].mxu0
      %825 = vmatprep.mubr.bf16.mxu0 0
      %826 = vmatmul.mubr.bf16.gmra.mrb[0].mxu0 %v656
      %v827 = vpop.f32.mrb[0].mxu0
      %v828 = vadd.f32 0.0, %v827
      %v829 = vpop.f32.mrb[0].mxu0
      %v830 = vpop.f32.mrb[0].mxu0
      %v831 = vadd.f32 0.0, %v830
      %v832 = vpop.f32.mrb[0].mxu0
      %833 = vmatprep.mubr.bf16.mxu0 0
      %834 = vmatmul.mubr.bf16.gmra.mrb[0].mxu0 %v659
      %v835 = vpop.f32.mrb[0].mxu0
      %v836 = vadd.f32 0.0, %v835
      %v837 = vpop.f32.mrb[0].mxu0
      %v838 = vpop.f32.mrb[0].mxu0
      %v839 = vadd.f32 0.0, %v838
      %v840 = vpop.f32.mrb[0].mxu0
      %841 = vmatprep.mubr.bf16.mxu0 0
      %842 = vmatmul.mubr.bf16.gmra.mrb[0].mxu0 %v662
      %v843 = vpop.f32.mrb[0].mxu0
      %v844 = vadd.f32 0.0, %v843
      %v845 = vpop.f32.mrb[0].mxu0
      %v846 = vpop.f32.mrb[0].mxu0
      %v847 = vadd.f32 0.0, %v846
      %v848 = vpop.f32.mrb[0].mxu0
      %849 = vmatprep.mubr.bf16.mxu0 0
      %850 = vmatmul.mubr.bf16.gmra.mrb[0].mxu0 %v665
      %v851 = vpop.f32.mrb[0].mxu0
      %v852 = vadd.f32 0.0, %v851
      %v853 = vpop.f32.mrb[0].mxu0
      %v854 = vpop.f32.mrb[0].mxu0
      %v855 = vadd.f32 0.0, %v854
      %v856 = vpop.f32.mrb[0].mxu0
      %857 = vmatprep.mubr.bf16.mxu0 0
      %858 = vmatmul.mubr.bf16.gmra.mrb[0].mxu0 %v668
      %v859 = vpop.f32.mrb[0].mxu0
      %v860 = vadd.f32 0.0, %v859
      %v861 = vpop.f32.mrb[0].mxu0
      %v862 = vpop.f32.mrb[0].mxu0
      %v863 = vadd.f32 0.0, %v862
      %v864 = vpop.f32.mrb[0].mxu0
      %865 = vmatprep.mubr.bf16.mxu0 0
      %866 = vmatmul.mubr.bf16.gmra.mrb[0].mxu0 %v671
      %v867 = vpop.f32.mrb[0].mxu0
      %v868 = vadd.f32 0.0, %v867
      %v869 = vpop.f32.mrb[0].mxu0
      %v870 = vpop.f32.mrb[0].mxu0
      %v871 = vadd.f32 0.0, %v870
      %v872 = vpop.f32.mrb[0].mxu0
      %873 = vmatprep.mubr.bf16.mxu0 0
      %874 = vmatmul.mubr.bf16.gmra.mrb[0].mxu0 %v674
      %v875 = vpop.f32.mrb[0].mxu0
      %v876 = vadd.f32 0.0, %v875
      %v877 = vpop.f32.mrb[0].mxu0
      %v878 = vpop.f32.mrb[0].mxu0
      %v879 = vadd.f32 0.0, %v878
      %v880 = vpop.f32.mrb[0].mxu0
      %881 = vmatprep.mubr.bf16.mxu0 0
      %882 = vmatmul.mubr.bf16.gmra.mrb[0].mxu0 %v677
      %v883 = vpop.f32.mrb[0].mxu0
      %v884 = vadd.f32 0.0, %v883
      %v885 = vpop.f32.mrb[0].mxu0
      %v886 = vpop.f32.mrb[0].mxu0
      %v887 = vadd.f32 0.0, %v886
      %v888 = vpop.f32.mrb[0].mxu0
      %889 = vmatprep.mubr.bf16.mxu0 0
      %890 = vmatmul.mubr.bf16.gmra.mrb[0].mxu0 %v680
      %v891 = vpop.f32.mrb[0].mxu0
      %v892 = vadd.f32 0.0, %v891
      %v893 = vpop.f32.mrb[0].mxu0
      %v894 = vpop.f32.mrb[0].mxu0
      %v895 = vadd.f32 0.0, %v894
      %v896 = vpop.f32.mrb[0].mxu0
      %897 = vmatprep.mubr.bf16.mxu0 0
      %898 = vmatmul.mubr.bf16.gmra.mrb[0].mxu0 %v683
      %v899 = vpop.f32.mrb[0].mxu0
      %v900 = vadd.f32 0.0, %v899
      %v901 = vpop.f32.mrb[0].mxu0
      %v902 = vpop.f32.mrb[0].mxu0
      %v903 = vadd.f32 0.0, %v902
      %v904 = vpop.f32.mrb[0].mxu0
      %905 = vmatprep.mubr.bf16.mxu0 0
      %906 = vmatmul.mubr.bf16.gmra.mrb[0].mxu0 %v686
      %v907 = vpop.f32.mrb[0].mxu0
      %v908 = vadd.f32 0.0, %v907
      %v909 = vpop.f32.mrb[0].mxu0
      %v910 = vpop.f32.mrb[0].mxu0
      %v911 = vadd.f32 0.0, %v910
      %v912 = vpop.f32.mrb[0].mxu0
      %913 = vmatprep.mubr.bf16.mxu0 0
      %914 = vmatmul.mubr.bf16.gmra.mrb[0].mxu0 %v689
      %v915 = vpop.f32.mrb[0].mxu0
      %v916 = vadd.f32 0.0, %v915
      %v917 = vpop.f32.mrb[0].mxu0
      %v918 = vpop.f32.mrb[0].mxu0
      %v919 = vadd.f32 0.0, %v918
      %v920 = vpop.f32.mrb[0].mxu0
      %921 = vmatprep.mubr.bf16.mxu0 0
      %922 = vmatmul.mubr.bf16.gmra.mrb[0].mxu0 %v692
      %v923 = vpop.f32.mrb[0].mxu0
      %v924 = vadd.f32 0.0, %v923
      %v925 = vpop.f32.mrb[0].mxu0
      %v926 = vpop.f32.mrb[0].mxu0
      %v927 = vadd.f32 0.0, %v926
      %v928 = vpop.f32.mrb[0].mxu0
      %929 = vmatprep.mubr.bf16.mxu0 0
      %930 = vmatmul.mubr.bf16.gmra.mrb[0].mxu0 %v695
      %v931 = vpop.f32.mrb[0].mxu0
      %v932 = vadd.f32 0.0, %v931
      %v933 = vpop.f32.mrb[0].mxu0
      %v934 = vpop.f32.mrb[0].mxu0
      %v935 = vadd.f32 0.0, %v934
      %v936 = vpop.f32.mrb[0].mxu0
      %937 = vmatprep.mubr.bf16.mxu0 0
      %938 = vmatmul.mubr.bf16.gmra.mrb[0].mxu0 %v698
      %v939 = vpop.f32.mrb[0].mxu0
      %v940 = vadd.f32 0.0, %v939
      %v941 = vpop.f32.mrb[0].mxu0
      %v942 = vpop.f32.mrb[0].mxu0
      %v943 = vadd.f32 0.0, %v942
      %v944 = vpop.f32.mrb[0].mxu0
      %945 = vmatprep.mubr.bf16.mxu0 0
      %946 = vmatmul.mubr.bf16.gmra.mrb[0].mxu0 %v701
      %v947 = vpop.f32.mrb[0].mxu0
      %v948 = vadd.f32 0.0, %v947
      %v949 = vpop.f32.mrb[0].mxu0
      %v950 = vpop.f32.mrb[0].mxu0
      %v951 = vadd.f32 0.0, %v950
      %v952 = vpop.f32.mrb[0].mxu0
      %953 = vmatprep.mubr.bf16.mxu0 0
      %954 = vmatmul.mubr.bf16.gmra.mrb[0].mxu0 %v704
      %v955 = vpop.f32.mrb[0].mxu0
      %v956 = vadd.f32 0.0, %v955
      %v957 = vpop.f32.mrb[0].mxu0
      %v958 = vpop.f32.mrb[0].mxu0
      %v959 = vadd.f32 0.0, %v958
      %v960 = vpop.f32.mrb[0].mxu0
      %961 = vmatprep.mubr.bf16.mxu0 0
      %962 = vmatmul.mubr.bf16.gmra.mrb[0].mxu0 %v707
      %v963 = vpop.f32.mrb[0].mxu0
      %v964 = vadd.f32 0.0, %v963
      %v965 = vpop.f32.mrb[0].mxu0
      %v966 = vpop.f32.mrb[0].mxu0
      %v967 = vadd.f32 0.0, %v966
      %v968 = vpop.f32.mrb[0].mxu0
      %969 = vmatprep.mubr.bf16.mxu0 0
      %970 = vmatmul.mubr.bf16.gmra.mrb[0].mxu0 %v710
      %v971 = vpop.f32.mrb[0].mxu0
      %v972 = vadd.f32 0.0, %v971
      %v973 = vpop.f32.mrb[0].mxu0
      %v974 = vpop.f32.mrb[0].mxu0
      %v975 = vadd.f32 0.0, %v974
      %v976 = vpop.f32.mrb[0].mxu0
      %977 = vmatprep.mubr.bf16.mxu0 0
      %978 = vmatmul.mubr.bf16.gmra.mrb[0].mxu0 %v713
      %v979 = vpop.f32.mrb[0].mxu0
      %v980 = vadd.f32 0.0, %v979
      %v981 = vpop.f32.mrb[0].mxu0
      %v982 = vpop.f32.mrb[0].mxu0
      %v983 = vadd.f32 0.0, %v982
      %v984 = vpop.f32.mrb[0].mxu0
      %985 = vmatprep.mubr.bf16.mxu0 0
      %986 = vmatmul.mubr.bf16.gmra.mrb[0].mxu0 %v716
      %v987 = vpop.f32.mrb[0].mxu0
      %v988 = vadd.f32 0.0, %v987
      %v989 = vpop.f32.mrb[0].mxu0
      %v990 = vpop.f32.mrb[0].mxu0
      %v991 = vadd.f32 0.0, %v990
      %v992 = vpop.f32.mrb[0].mxu0
      %993 = vmatprep.mubr.bf16.mxu0 0
      %994 = vmatmul.mubr.bf16.gmra.mrb[0].mxu0 %v719
      %v995 = vpop.f32.mrb[0].mxu0
      %v996 = vadd.f32 0.0, %v995
      %v997 = vpop.f32.mrb[0].mxu0
      %v998 = vpop.f32.mrb[0].mxu0
      %v999 = vadd.f32 0.0, %v998
      %v1000 = vpop.f32.mrb[0].mxu0
      %1001 = vmatprep.mubr.bf16.mxu0 0
      %1002 = vmatmul.mubr.bf16.gmra.mrb[0].mxu0 %v722
      %v1003 = vpop.f32.mrb[0].mxu0
      %v1004 = vadd.f32 0.0, %v1003
      %v1005 = vpop.f32.mrb[0].mxu0
      %v1006 = vpop.f32.mrb[0].mxu0
      %v1007 = vadd.f32 0.0, %v1006
      %v1008 = vpop.f32.mrb[0].mxu0
      %1009 = vmatprep.mubr.bf16.mxu0 0
      %1010 = vmatmul.mubr.bf16.gmra.mrb[0].mxu0 %v725
      %v1011 = vpop.f32.mrb[0].mxu0
      %v1012 = vadd.f32 0.0, %v1011
      %v1013 = vpop.f32.mrb[0].mxu0
      %v1014 = vpop.f32.mrb[0].mxu0
      %v1015 = vadd.f32 0.0, %v1014
      %v1016 = vpop.f32.mrb[0].mxu0
      %1017 = vmatprep.mubr.bf16.mxu0 0
      %1018 = vmatmul.mubr.bf16.gmra.mrb[0].mxu0 %v728
      %v1019 = vpop.f32.mrb[0].mxu0
      %v1020 = vadd.f32 0.0, %v1019
      %v1021 = vpop.f32.mrb[0].mxu0
      %v1022 = vpop.f32.mrb[0].mxu0
      %v1023 = vadd.f32 0.0, %v1022
      %v1024 = vpop.f32.mrb[0].mxu0
      %1025 = vdwg.mxu0
      %v1026 = vadd.f32 %v330, %v772
      %v1027 = vadd.f32 %v331, %v775
      %v1028 = vadd.f32 %v332, %v780
      %v1029 = vadd.f32 %v333, %v783
      %v1030 = vadd.f32 %v334, %v788
      %v1031 = vadd.f32 %v335, %v791
      %v1032 = vadd.f32 %v336, %v796
      %v1033 = vadd.f32 %v337, %v799
      %v1034 = vadd.f32 %v338, %v804
      %v1035 = vadd.f32 %v339, %v807
      %v1036 = vadd.f32 %v340, %v812
      %v1037 = vadd.f32 %v341, %v815
      %v1038 = vadd.f32 %v342, %v820
      %v1039 = vadd.f32 %v343, %v823
      %v1040 = vadd.f32 %v344, %v828
      %v1041 = vadd.f32 %v345, %v831
      %v1042 = vadd.f32 %v346, %v836
      %v1043 = vadd.f32 %v347, %v839
      %v1044 = vadd.f32 %v348, %v844
      %v1045 = vadd.f32 %v349, %v847
      %v1046 = vadd.f32 %v350, %v852
      %v1047 = vadd.f32 %v351, %v855
      %v1048 = vadd.f32 %v352, %v860
      %v1049 = vadd.f32 %v353, %v863
      %v1050 = vadd.f32 %v354, %v868
      %v1051 = vadd.f32 %v355, %v871
      %v1052 = vadd.f32 %v356, %v876
      %v1053 = vadd.f32 %v357, %v879
      %v1054 = vadd.f32 %v358, %v884
      %v1055 = vadd.f32 %v359, %v887
      %v1056 = vadd.f32 %v360, %v892
      %v1057 = vadd.f32 %v361, %v895
      %v1058 = vadd.f32 %v362, %v900
      %v1059 = vadd.f32 %v363, %v903
      %v1060 = vadd.f32 %v364, %v908
      %v1061 = vadd.f32 %v365, %v911
      %v1062 = vadd.f32 %v366, %v916
      %v1063 = vadd.f32 %v367, %v919
      %v1064 = vadd.f32 %v368, %v924
      %v1065 = vadd.f32 %v369, %v927
      %v1066 = vadd.f32 %v370, %v932
      %v1067 = vadd.f32 %v371, %v935
      %v1068 = vadd.f32 %v372, %v940
      %v1069 = vadd.f32 %v373, %v943
      %v1070 = vadd.f32 %v374, %v948
      %v1071 = vadd.f32 %v375, %v951
      %v1072 = vadd.f32 %v376, %v956
      %v1073 = vadd.f32 %v377, %v959
      %v1074 = vadd.f32 %v378, %v964
      %v1075 = vadd.f32 %v379, %v967
      %v1076 = vadd.f32 %v380, %v972
      %v1077 = vadd.f32 %v381, %v975
      %v1078 = vadd.f32 %v382, %v980
      %v1079 = vadd.f32 %v383, %v983
      %v1080 = vadd.f32 %v384, %v988
      %v1081 = vadd.f32 %v385, %v991
      %v1082 = vadd.f32 %v386, %v996
      %v1083 = vadd.f32 %v387, %v999
      %v1084 = vadd.f32 %v388, %v1004
      %v1085 = vadd.f32 %v389, %v1007
      %v1086 = vadd.f32 %v390, %v1012
      %v1087 = vadd.f32 %v391, %v1015
      %v1088 = vadd.f32 %v392, %v1020
      %v1089 = vadd.f32 %v393, %v1023
      %vm1090 = vcmask 523264
      %1091 = vst.msk [vmem:[#allocation2] sm:$0xff] %vm1090, %v1026
      %1092 = vst.msk [vmem:[#allocation2 + $0x8] sm:$0xff] %vm1090, %v1027
      %1093 = vst.msk [vmem:[#allocation2 + $0x10] sm:$0xff] %vm1090, %v1028
      %1094 = vst.msk [vmem:[#allocation2 + $0x18] sm:$0xff] %vm1090, %v1029
      %1095 = vst.msk [vmem:[#allocation2 + $0x20] sm:$0xff] %vm1090, %v1030
      %1096 = vst.msk [vmem:[#allocation2 + $0x28] sm:$0xff] %vm1090, %v1031
      %1097 = vst.msk [vmem:[#allocation2 + $0x30] sm:$0xff] %vm1090, %v1032
      %1098 = vst.msk [vmem:[#allocation2 + $0x38] sm:$0xff] %vm1090, %v1033
      %1099 = vst.msk [vmem:[#allocation2 + $0x40] sm:$0xff] %vm1090, %v1034
      %1100 = vst.msk [vmem:[#allocation2 + $0x48] sm:$0xff] %vm1090, %v1035
      %1101 = vst.msk [vmem:[#allocation2 + $0x50] sm:$0xff] %vm1090, %v1036
      %1102 = vst.msk [vmem:[#allocation2 + $0x58] sm:$0xff] %vm1090, %v1037
      %1103 = vst.msk [vmem:[#allocation2 + $0x60] sm:$0xff] %vm1090, %v1038
      %1104 = vst.msk [vmem:[#allocation2 + $0x68] sm:$0xff] %vm1090, %v1039
      %1105 = vst.msk [vmem:[#allocation2 + $0x70] sm:$0xff] %vm1090, %v1040
      %1106 = vst.msk [vmem:[#allocation2 + $0x78] sm:$0xff] %vm1090, %v1041
      %1107 = vst.msk [vmem:[#allocation2 + $0x80] sm:$0xff] %vm1090, %v1042
      %1108 = vst.msk [vmem:[#allocation2 + $0x88] sm:$0xff] %vm1090, %v1043
      %1109 = vst.msk [vmem:[#allocation2 + $0x90] sm:$0xff] %vm1090, %v1044
      %1110 = vst.msk [vmem:[#allocation2 + $0x98] sm:$0xff] %vm1090, %v1045
      %1111 = vst.msk [vmem:[#allocation2 + $0xa0] sm:$0xff] %vm1090, %v1046
      %1112 = vst.msk [vmem:[#allocation2 + $0xa8] sm:$0xff] %vm1090, %v1047
      %1113 = vst.msk [vmem:[#allocation2 + $0xb0] sm:$0xff] %vm1090, %v1048
      %1114 = vst.msk [vmem:[#allocation2 + $0xb8] sm:$0xff] %vm1090, %v1049
      %1115 = vst.msk [vmem:[#allocation2 + $0xc0] sm:$0xff] %vm1090, %v1050
      %1116 = vst.msk [vmem:[#allocation2 + $0xc8] sm:$0xff] %vm1090, %v1051
      %1117 = vst.msk [vmem:[#allocation2 + $0xd0] sm:$0xff] %vm1090, %v1052
      %1118 = vst.msk [vmem:[#allocation2 + $0xd8] sm:$0xff] %vm1090, %v1053
      %1119 = vst.msk [vmem:[#allocation2 + $0xe0] sm:$0xff] %vm1090, %v1054
      %1120 = vst.msk [vmem:[#allocation2 + $0xe8] sm:$0xff] %vm1090, %v1055
      %1121 = vst.msk [vmem:[#allocation2 + $0xf0] sm:$0xff] %vm1090, %v1056
      %1122 = vst.msk [vmem:[#allocation2 + $0xf8] sm:$0xff] %vm1090, %v1057
      %1123 = vst.msk [vmem:[#allocation2 + $0x100] sm:$0xff] %vm1090, %v1058
      %1124 = vst.msk [vmem:[#allocation2 + $0x108] sm:$0xff] %vm1090, %v1059
      %1125 = vst.msk [vmem:[#allocation2 + $0x110] sm:$0xff] %vm1090, %v1060
      %1126 = vst.msk [vmem:[#allocation2 + $0x118] sm:$0xff] %vm1090, %v1061
      %1127 = vst.msk [vmem:[#allocation2 + $0x120] sm:$0xff] %vm1090, %v1062
      %1128 = vst.msk [vmem:[#allocation2 + $0x128] sm:$0xff] %vm1090, %v1063
      %1129 = vst.msk [vmem:[#allocation2 + $0x130] sm:$0xff] %vm1090, %v1064
      %1130 = vst.msk [vmem:[#allocation2 + $0x138] sm:$0xff] %vm1090, %v1065
      %1131 = vst.msk [vmem:[#allocation2 + $0x140] sm:$0xff] %vm1090, %v1066
      %1132 = vst.msk [vmem:[#allocation2 + $0x148] sm:$0xff] %vm1090, %v1067
      %1133 = vst.msk [vmem:[#allocation2 + $0x150] sm:$0xff] %vm1090, %v1068
      %1134 = vst.msk [vmem:[#allocation2 + $0x158] sm:$0xff] %vm1090, %v1069
      %1135 = vst.msk [vmem:[#allocation2 + $0x160] sm:$0xff] %vm1090, %v1070
      %1136 = vst.msk [vmem:[#allocation2 + $0x168] sm:$0xff] %vm1090, %v1071
      %1137 = vst.msk [vmem:[#allocation2 + $0x170] sm:$0xff] %vm1090, %v1072
      %1138 = vst.msk [vmem:[#allocation2 + $0x178] sm:$0xff] %vm1090, %v1073
      %1139 = vst.msk [vmem:[#allocation2 + $0x180] sm:$0xff] %vm1090, %v1074
      %1140 = vst.msk [vmem:[#allocation2 + $0x188] sm:$0xff] %vm1090, %v1075
      %1141 = vst.msk [vmem:[#allocation2 + $0x190] sm:$0xff] %vm1090, %v1076
      %1142 = vst.msk [vmem:[#allocation2 + $0x198] sm:$0xff] %vm1090, %v1077
      %1143 = vst.msk [vmem:[#allocation2 + $0x1a0] sm:$0xff] %vm1090, %v1078
      %1144 = vst.msk [vmem:[#allocation2 + $0x1a8] sm:$0xff] %vm1090, %v1079
      %1145 = vst.msk [vmem:[#allocation2 + $0x1b0] sm:$0xff] %vm1090, %v1080
      %1146 = vst.msk [vmem:[#allocation2 + $0x1b8] sm:$0xff] %vm1090, %v1081
      %1147 = vst.msk [vmem:[#allocation2 + $0x1c0] sm:$0xff] %vm1090, %v1082
      %1148 = vst.msk [vmem:[#allocation2 + $0x1c8] sm:$0xff] %vm1090, %v1083
      %1149 = vst.msk [vmem:[#allocation2 + $0x1d0] sm:$0xff] %vm1090, %v1084
      %1150 = vst.msk [vmem:[#allocation2 + $0x1d8] sm:$0xff] %vm1090, %v1085
      %1151 = vst.msk [vmem:[#allocation2 + $0x1e0] sm:$0xff] %vm1090, %v1086
      %1152 = vst.msk [vmem:[#allocation2 + $0x1e8] sm:$0xff] %vm1090, %v1087
      %1153 = vst.msk [vmem:[#allocation2 + $0x1f0] sm:$0xff] %vm1090, %v1088
      %1154 = vst.msk [vmem:[#allocation2 + $0x1f8] sm:$0xff] %vm1090, %v1089
      // Predicated region
      $region37: #{tpu_custom_call.1} parent=31 // pred_check
        %p1155 = pneg %p261
      $region38: #{tpu_custom_call.1} parent=31 // pred_check_branch
        %1157 = sbr.rel (%p1155) target = $region40
      $region39: #{tpu_custom_call.1} parent=31 // pred_region
        %v1158 = vld [vmem:[#allocation2] sm:$0xff]
        %v1159 = vld [vmem:[#allocation2 + $0x8] sm:$0xff]
        %v1160 = vld [vmem:[#allocation2 + $0x10] sm:$0xff]
        %v1161 = vld [vmem:[#allocation2 + $0x18] sm:$0xff]
        %v1162 = vld [vmem:[#allocation2 + $0x20] sm:$0xff]
        %v1163 = vld [vmem:[#allocation2 + $0x28] sm:$0xff]
        %v1164 = vld [vmem:[#allocation2 + $0x30] sm:$0xff]
        %v1165 = vld [vmem:[#allocation2 + $0x38] sm:$0xff]
        %v1166 = vld [vmem:[#allocation2 + $0x40] sm:$0xff]
        %v1167 = vld [vmem:[#allocation2 + $0x48] sm:$0xff]
        %v1168 = vld [vmem:[#allocation2 + $0x50] sm:$0xff]
        %v1169 = vld [vmem:[#allocation2 + $0x58] sm:$0xff]
        %v1170 = vld [vmem:[#allocation2 + $0x60] sm:$0xff]
        %v1171 = vld [vmem:[#allocation2 + $0x68] sm:$0xff]
        %v1172 = vld [vmem:[#allocation2 + $0x70] sm:$0xff]
        %v1173 = vld [vmem:[#allocation2 + $0x78] sm:$0xff]
        %v1174 = vld [vmem:[#allocation2 + $0x80] sm:$0xff]
        %v1175 = vld [vmem:[#allocation2 + $0x88] sm:$0xff]
        %v1176 = vld [vmem:[#allocation2 + $0x90] sm:$0xff]
        %v1177 = vld [vmem:[#allocation2 + $0x98] sm:$0xff]
        %v1178 = vld [vmem:[#allocation2 + $0xa0] sm:$0xff]
        %v1179 = vld [vmem:[#allocation2 + $0xa8] sm:$0xff]
        %v1180 = vld [vmem:[#allocation2 + $0xb0] sm:$0xff]
        %v1181 = vld [vmem:[#allocation2 + $0xb8] sm:$0xff]
        %v1182 = vld [vmem:[#allocation2 + $0xc0] sm:$0xff]
        %v1183 = vld [vmem:[#allocation2 + $0xc8] sm:$0xff]
        %v1184 = vld [vmem:[#allocation2 + $0xd0] sm:$0xff]
        %v1185 = vld [vmem:[#allocation2 + $0xd8] sm:$0xff]
        %v1186 = vld [vmem:[#allocation2 + $0xe0] sm:$0xff]
        %v1187 = vld [vmem:[#allocation2 + $0xe8] sm:$0xff]
        %v1188 = vld [vmem:[#allocation2 + $0xf0] sm:$0xff]
        %v1189 = vld [vmem:[#allocation2 + $0xf8] sm:$0xff]
        %v1190 = vld [vmem:[#allocation2 + $0x100] sm:$0xff]
        %v1191 = vld [vmem:[#allocation2 + $0x108] sm:$0xff]
        %v1192 = vld [vmem:[#allocation2 + $0x110] sm:$0xff]
        %v1193 = vld [vmem:[#allocation2 + $0x118] sm:$0xff]
        %v1194 = vld [vmem:[#allocation2 + $0x120] sm:$0xff]
        %v1195 = vld [vmem:[#allocation2 + $0x128] sm:$0xff]
        %v1196 = vld [vmem:[#allocation2 + $0x130] sm:$0xff]
        %v1197 = vld [vmem:[#allocation2 + $0x138] sm:$0xff]
        %v1198 = vld [vmem:[#allocation2 + $0x140] sm:$0xff]
        %v1199 = vld [vmem:[#allocation2 + $0x148] sm:$0xff]
        %v1200 = vld [vmem:[#allocation2 + $0x150] sm:$0xff]
        %v1201 = vld [vmem:[#allocation2 + $0x158] sm:$0xff]
        %v1202 = vld [vmem:[#allocation2 + $0x160] sm:$0xff]
        %v1203 = vld [vmem:[#allocation2 + $0x168] sm:$0xff]
        %v1204 = vld [vmem:[#allocation2 + $0x170] sm:$0xff]
        %v1205 = vld [vmem:[#allocation2 + $0x178] sm:$0xff]
        %v1206 = vld [vmem:[#allocation2 + $0x180] sm:$0xff]
        %v1207 = vld [vmem:[#allocation2 + $0x188] sm:$0xff]
        %v1208 = vld [vmem:[#allocation2 + $0x190] sm:$0xff]
        %v1209 = vld [vmem:[#allocation2 + $0x198] sm:$0xff]
        %v1210 = vld [vmem:[#allocation2 + $0x1a0] sm:$0xff]
        %v1211 = vld [vmem:[#allocation2 + $0x1a8] sm:$0xff]
        %v1212 = vld [vmem:[#allocation2 + $0x1b0] sm:$0xff]
        %v1213 = vld [vmem:[#allocation2 + $0x1b8] sm:$0xff]
        %v1214 = vld [vmem:[#allocation2 + $0x1c0] sm:$0xff]
        %v1215 = vld [vmem:[#allocation2 + $0x1c8] sm:$0xff]
        %v1216 = vld [vmem:[#allocation2 + $0x1d0] sm:$0xff]
        %v1217 = vld [vmem:[#allocation2 + $0x1d8] sm:$0xff]
        %v1218 = vld [vmem:[#allocation2 + $0x1e0] sm:$0xff]
        %v1219 = vld [vmem:[#allocation2 + $0x1e8] sm:$0xff]
        %v1220 = vld [vmem:[#allocation2 + $0x1f0] sm:$0xff]
        %v1221 = vld [vmem:[#allocation2 + $0x1f8] sm:$0xff]
        %v1222 = vld [vmem:[%s2] sm:$0x1]
        %v1224 = vlaneseq
        %v1225 = vshrl.u32 %v1224, 7
        %v1226 = vsub.s32 0, %v1225
        %v1227 = vrot.slane %v1222, %v1226
        %v1229 = vadd.f32 %v1158, %v1227
        %v1230 = vadd.f32 %v1159, %v1227
        %v1231 = vadd.f32 %v1160, %v1227
        %v1232 = vadd.f32 %v1161, %v1227
        %v1233 = vadd.f32 %v1162, %v1227
        %v1234 = vadd.f32 %v1163, %v1227
        %v1235 = vadd.f32 %v1164, %v1227
        %v1236 = vadd.f32 %v1165, %v1227
        %v1237 = vadd.f32 %v1166, %v1227
        %v1238 = vadd.f32 %v1167, %v1227
        %v1239 = vadd.f32 %v1168, %v1227
        %v1240 = vadd.f32 %v1169, %v1227
        %v1241 = vadd.f32 %v1170, %v1227
        %v1242 = vadd.f32 %v1171, %v1227
        %v1243 = vadd.f32 %v1172, %v1227
        %v1244 = vadd.f32 %v1173, %v1227
        %v1245 = vadd.f32 %v1174, %v1227
        %v1246 = vadd.f32 %v1175, %v1227
        %v1247 = vadd.f32 %v1176, %v1227
        %v1248 = vadd.f32 %v1177, %v1227
        %v1249 = vadd.f32 %v1178, %v1227
        %v1250 = vadd.f32 %v1179, %v1227
        %v1251 = vadd.f32 %v1180, %v1227
        %v1252 = vadd.f32 %v1181, %v1227
        %v1253 = vadd.f32 %v1182, %v1227
        %v1254 = vadd.f32 %v1183, %v1227
        %v1255 = vadd.f32 %v1184, %v1227
        %v1256 = vadd.f32 %v1185, %v1227
        %v1257 = vadd.f32 %v1186, %v1227
        %v1258 = vadd.f32 %v1187, %v1227
        %v1259 = vadd.f32 %v1188, %v1227
        %v1260 = vadd.f32 %v1189, %v1227
        %v1261 = vadd.f32 %v1190, %v1227
        %v1262 = vadd.f32 %v1191, %v1227
        %v1263 = vadd.f32 %v1192, %v1227
        %v1264 = vadd.f32 %v1193, %v1227
        %v1265 = vadd.f32 %v1194, %v1227
        %v1266 = vadd.f32 %v1195, %v1227
        %v1267 = vadd.f32 %v1196, %v1227
        %v1268 = vadd.f32 %v1197, %v1227
        %v1269 = vadd.f32 %v1198, %v1227
        %v1270 = vadd.f32 %v1199, %v1227
        %v1271 = vadd.f32 %v1200, %v1227
        %v1272 = vadd.f32 %v1201, %v1227
        %v1273 = vadd.f32 %v1202, %v1227
        %v1274 = vadd.f32 %v1203, %v1227
        %v1275 = vadd.f32 %v1204, %v1227
        %v1276 = vadd.f32 %v1205, %v1227
        %v1277 = vadd.f32 %v1206, %v1227
        %v1278 = vadd.f32 %v1207, %v1227
        %v1279 = vadd.f32 %v1208, %v1227
        %v1280 = vadd.f32 %v1209, %v1227
        %v1281 = vadd.f32 %v1210, %v1227
        %v1282 = vadd.f32 %v1211, %v1227
        %v1283 = vadd.f32 %v1212, %v1227
        %v1284 = vadd.f32 %v1213, %v1227
        %v1285 = vadd.f32 %v1214, %v1227
        %v1286 = vadd.f32 %v1215, %v1227
        %v1287 = vadd.f32 %v1216, %v1227
        %v1288 = vadd.f32 %v1217, %v1227
        %v1289 = vadd.f32 %v1218, %v1227
        %v1290 = vadd.f32 %v1219, %v1227
        %v1291 = vadd.f32 %v1220, %v1227
        %v1292 = vadd.f32 %v1221, %v1227
        %1293 = vst.msk [vmem:[%s252] sm:$0xff] %vm1090, %v1229
        %1294 = vst.msk [vmem:[%s252 + $0x8] sm:$0xff] %vm1090, %v1230
        %1295 = vst.msk [vmem:[%s252 + $0x10] sm:$0xff] %vm1090, %v1231
        %1296 = vst.msk [vmem:[%s252 + $0x18] sm:$0xff] %vm1090, %v1232
        %1297 = vst.msk [vmem:[%s252 + $0x20] sm:$0xff] %vm1090, %v1233
        %1298 = vst.msk [vmem:[%s252 + $0x28] sm:$0xff] %vm1090, %v1234
        %1299 = vst.msk [vmem:[%s252 + $0x30] sm:$0xff] %vm1090, %v1235
        %1300 = vst.msk [vmem:[%s252 + $0x38] sm:$0xff] %vm1090, %v1236
        %1301 = vst.msk [vmem:[%s252 + $0x40] sm:$0xff] %vm1090, %v1237
        %1302 = vst.msk [vmem:[%s252 + $0x48] sm:$0xff] %vm1090, %v1238
        %1303 = vst.msk [vmem:[%s252 + $0x50] sm:$0xff] %vm1090, %v1239
        %1304 = vst.msk [vmem:[%s252 + $0x58] sm:$0xff] %vm1090, %v1240
        %1305 = vst.msk [vmem:[%s252 + $0x60] sm:$0xff] %vm1090, %v1241
        %1306 = vst.msk [vmem:[%s252 + $0x68] sm:$0xff] %vm1090, %v1242
        %1307 = vst.msk [vmem:[%s252 + $0x70] sm:$0xff] %vm1090, %v1243
        %1308 = vst.msk [vmem:[%s252 + $0x78] sm:$0xff] %vm1090, %v1244
        %1309 = vst.msk [vmem:[%s252 + $0x80] sm:$0xff] %vm1090, %v1245
        %1310 = vst.msk [vmem:[%s252 + $0x88] sm:$0xff] %vm1090, %v1246
        %1311 = vst.msk [vmem:[%s252 + $0x90] sm:$0xff] %vm1090, %v1247
        %1312 = vst.msk [vmem:[%s252 + $0x98] sm:$0xff] %vm1090, %v1248
        %1313 = vst.msk [vmem:[%s252 + $0xa0] sm:$0xff] %vm1090, %v1249
        %1314 = vst.msk [vmem:[%s252 + $0xa8] sm:$0xff] %vm1090, %v1250
        %1315 = vst.msk [vmem:[%s252 + $0xb0] sm:$0xff] %vm1090, %v1251
        %1316 = vst.msk [vmem:[%s252 + $0xb8] sm:$0xff] %vm1090, %v1252
        %1317 = vst.msk [vmem:[%s252 + $0xc0] sm:$0xff] %vm1090, %v1253
        %1318 = vst.msk [vmem:[%s252 + $0xc8] sm:$0xff] %vm1090, %v1254
        %1319 = vst.msk [vmem:[%s252 + $0xd0] sm:$0xff] %vm1090, %v1255
        %1320 = vst.msk [vmem:[%s252 + $0xd8] sm:$0xff] %vm1090, %v1256
        %1321 = vst.msk [vmem:[%s252 + $0xe0] sm:$0xff] %vm1090, %v1257
        %1322 = vst.msk [vmem:[%s252 + $0xe8] sm:$0xff] %vm1090, %v1258
        %1323 = vst.msk [vmem:[%s252 + $0xf0] sm:$0xff] %vm1090, %v1259
        %1324 = vst.msk [vmem:[%s252 + $0xf8] sm:$0xff] %vm1090, %v1260
        %1325 = vst.msk [vmem:[%s252 + $0x100] sm:$0xff] %vm1090, %v1261
        %1326 = vst.msk [vmem:[%s252 + $0x108] sm:$0xff] %vm1090, %v1262
        %1327 = vst.msk [vmem:[%s252 + $0x110] sm:$0xff] %vm1090, %v1263
        %1328 = vst.msk [vmem:[%s252 + $0x118] sm:$0xff] %vm1090, %v1264
        %1329 = vst.msk [vmem:[%s252 + $0x120] sm:$0xff] %vm1090, %v1265
        %1330 = vst.msk [vmem:[%s252 + $0x128] sm:$0xff] %vm1090, %v1266
        %1331 = vst.msk [vmem:[%s252 + $0x130] sm:$0xff] %vm1090, %v1267
        %1332 = vst.msk [vmem:[%s252 + $0x138] sm:$0xff] %vm1090, %v1268
        %1333 = vst.msk [vmem:[%s252 + $0x140] sm:$0xff] %vm1090, %v1269
        %1334 = vst.msk [vmem:[%s252 + $0x148] sm:$0xff] %vm1090, %v1270
        %1335 = vst.msk [vmem:[%s252 + $0x150] sm:$0xff] %vm1090, %v1271
        %1336 = vst.msk [vmem:[%s252 + $0x158] sm:$0xff] %vm1090, %v1272
        %1337 = vst.msk [vmem:[%s252 + $0x160] sm:$0xff] %vm1090, %v1273
        %1338 = vst.msk [vmem:[%s252 + $0x168] sm:$0xff] %vm1090, %v1274
        %1339 = vst.msk [vmem:[%s252 + $0x170] sm:$0xff] %vm1090, %v1275
        %1340 = vst.msk [vmem:[%s252 + $0x178] sm:$0xff] %vm1090, %v1276
        %1341 = vst.msk [vmem:[%s252 + $0x180] sm:$0xff] %vm1090, %v1277
        %1342 = vst.msk [vmem:[%s252 + $0x188] sm:$0xff] %vm1090, %v1278
        %1343 = vst.msk [vmem:[%s252 + $0x190] sm:$0xff] %vm1090, %v1279
        %1344 = vst.msk [vmem:[%s252 + $0x198] sm:$0xff] %vm1090, %v1280
        %1345 = vst.msk [vmem:[%s252 + $0x1a0] sm:$0xff] %vm1090, %v1281
        %1346 = vst.msk [vmem:[%s252 + $0x1a8] sm:$0xff] %vm1090, %v1282
        %1347 = vst.msk [vmem:[%s252 + $0x1b0] sm:$0xff] %vm1090, %v1283
        %1348 = vst.msk [vmem:[%s252 + $0x1b8] sm:$0xff] %vm1090, %v1284
        %1349 = vst.msk [vmem:[%s252 + $0x1c0] sm:$0xff] %vm1090, %v1285
        %1350 = vst.msk [vmem:[%s252 + $0x1c8] sm:$0xff] %vm1090, %v1286
        %1351 = vst.msk [vmem:[%s252 + $0x1d0] sm:$0xff] %vm1090, %v1287
        %1352 = vst.msk [vmem:[%s252 + $0x1d8] sm:$0xff] %vm1090, %v1288
        %1353 = vst.msk [vmem:[%s252 + $0x1e0] sm:$0xff] %vm1090, %v1289
        %1354 = vst.msk [vmem:[%s252 + $0x1e8] sm:$0xff] %vm1090, %v1290
        %1355 = vst.msk [vmem:[%s252 + $0x1f0] sm:$0xff] %vm1090, %v1291
        %1356 = vst.msk [vmem:[%s252 + $0x1f8] sm:$0xff] %vm1090, %v1292
        %v1357 = vmax.f32 %v1229, 0.0
        %v1358 = vmax.f32 %v1230, 0.0
        %v1359 = vmax.f32 %v1231, 0.0
        %v1360 = vmax.f32 %v1232, 0.0
        %v1361 = vmax.f32 %v1233, 0.0
        %v1362 = vmax.f32 %v1234, 0.0
        %v1363 = vmax.f32 %v1235, 0.0
        %v1364 = vmax.f32 %v1236, 0.0
        %v1365 = vmax.f32 %v1237, 0.0
        %v1366 = vmax.f32 %v1238, 0.0
        %v1367 = vmax.f32 %v1239, 0.0
        %v1368 = vmax.f32 %v1240, 0.0
        %v1369 = vmax.f32 %v1241, 0.0
        %v1370 = vmax.f32 %v1242, 0.0
        %v1371 = vmax.f32 %v1243, 0.0
        %v1372 = vmax.f32 %v1244, 0.0
        %v1373 = vmax.f32 %v1245, 0.0
        %v1374 = vmax.f32 %v1246, 0.0
        %v1375 = vmax.f32 %v1247, 0.0
        %v1376 = vmax.f32 %v1248, 0.0
        %v1377 = vmax.f32 %v1249, 0.0
        %v1378 = vmax.f32 %v1250, 0.0
        %v1379 = vmax.f32 %v1251, 0.0
        %v1380 = vmax.f32 %v1252, 0.0
        %v1381 = vmax.f32 %v1253, 0.0
        %v1382 = vmax.f32 %v1254, 0.0
        %v1383 = vmax.f32 %v1255, 0.0
        %v1384 = vmax.f32 %v1256, 0.0
        %v1385 = vmax.f32 %v1257, 0.0
        %v1386 = vmax.f32 %v1258, 0.0
        %v1387 = vmax.f32 %v1259, 0.0
        %v1388 = vmax.f32 %v1260, 0.0
        %v1389 = vmax.f32 %v1261, 0.0
        %v1390 = vmax.f32 %v1262, 0.0
        %v1391 = vmax.f32 %v1263, 0.0
        %v1392 = vmax.f32 %v1264, 0.0
        %v1393 = vmax.f32 %v1265, 0.0
        %v1394 = vmax.f32 %v1266, 0.0
        %v1395 = vmax.f32 %v1267, 0.0
        %v1396 = vmax.f32 %v1268, 0.0
        %v1397 = vmax.f32 %v1269, 0.0
        %v1398 = vmax.f32 %v1270, 0.0
        %v1399 = vmax.f32 %v1271, 0.0
        %v1400 = vmax.f32 %v1272, 0.0
        %v1401 = vmax.f32 %v1273, 0.0
        %v1402 = vmax.f32 %v1274, 0.0
        %v1403 = vmax.f32 %v1275, 0.0
        %v1404 = vmax.f32 %v1276, 0.0
        %v1405 = vmax.f32 %v1277, 0.0
        %v1406 = vmax.f32 %v1278, 0.0
        %v1407 = vmax.f32 %v1279, 0.0
        %v1408 = vmax.f32 %v1280, 0.0
        %v1409 = vmax.f32 %v1281, 0.0
        %v1410 = vmax.f32 %v1282, 0.0
        %v1411 = vmax.f32 %v1283, 0.0
        %v1412 = vmax.f32 %v1284, 0.0
        %v1413 = vmax.f32 %v1285, 0.0
        %v1414 = vmax.f32 %v1286, 0.0
        %v1415 = vmax.f32 %v1287, 0.0
        %v1416 = vmax.f32 %v1288, 0.0
        %v1417 = vmax.f32 %v1289, 0.0
        %v1418 = vmax.f32 %v1290, 0.0
        %v1419 = vmax.f32 %v1291, 0.0
        %v1420 = vmax.f32 %v1292, 0.0
        %v1421 = vpack.c.bf16 %v1358, %v1357
        %v1422 = vpack.c.bf16 %v1360, %v1359
        %v1423 = vpack.c.bf16 %v1362, %v1361
        %v1424 = vpack.c.bf16 %v1364, %v1363
        %v1425 = vpack.c.bf16 %v1366, %v1365
        %v1426 = vpack.c.bf16 %v1368, %v1367
        %v1427 = vpack.c.bf16 %v1370, %v1369
        %v1428 = vpack.c.bf16 %v1372, %v1371
        %v1429 = vpack.c.bf16 %v1374, %v1373
        %v1430 = vpack.c.bf16 %v1376, %v1375
        %v1431 = vpack.c.bf16 %v1378, %v1377
        %v1432 = vpack.c.bf16 %v1380, %v1379
        %v1433 = vpack.c.bf16 %v1382, %v1381
        %v1434 = vpack.c.bf16 %v1384, %v1383
        %v1435 = vpack.c.bf16 %v1386, %v1385
        %v1436 = vpack.c.bf16 %v1388, %v1387
        %v1437 = vpack.c.bf16 %v1390, %v1389
        %v1438 = vpack.c.bf16 %v1392, %v1391
        %v1439 = vpack.c.bf16 %v1394, %v1393
        %v1440 = vpack.c.bf16 %v1396, %v1395
        %v1441 = vpack.c.bf16 %v1398, %v1397
        %v1442 = vpack.c.bf16 %v1400, %v1399
        %v1443 = vpack.c.bf16 %v1402, %v1401
        %v1444 = vpack.c.bf16 %v1404, %v1403
        %v1445 = vpack.c.bf16 %v1406, %v1405
        %v1446 = vpack.c.bf16 %v1408, %v1407
        %v1447 = vpack.c.bf16 %v1410, %v1409
        %v1448 = vpack.c.bf16 %v1412, %v1411
        %v1449 = vpack.c.bf16 %v1414, %v1413
        %v1450 = vpack.c.bf16 %v1416, %v1415
        %v1451 = vpack.c.bf16 %v1418, %v1417
        %v1452 = vpack.c.bf16 %v1420, %v1419
        %v1485 = vunpack.c.l.b16 %v1421
        %v1486 = vunpack.c.h.b16 %v1421
        %v1487 = vunpack.c.l.b16 %v1422
        %v1488 = vunpack.c.h.b16 %v1422
        %v1489 = vunpack.c.l.b16 %v1423
        %v1490 = vunpack.c.h.b16 %v1423
        %v1491 = vunpack.c.l.b16 %v1424
        %v1492 = vunpack.c.h.b16 %v1424
        %v1493 = vunpack.c.l.b16 %v1425
        %v1494 = vunpack.c.h.b16 %v1425
        %v1495 = vunpack.c.l.b16 %v1426
        %v1496 = vunpack.c.h.b16 %v1426
        %v1497 = vunpack.c.l.b16 %v1427
        %v1498 = vunpack.c.h.b16 %v1427
        %v1499 = vunpack.c.l.b16 %v1428
        %v1500 = vunpack.c.h.b16 %v1428
        %v1501 = vunpack.c.l.b16 %v1429
        %v1502 = vunpack.c.h.b16 %v1429
        %v1503 = vunpack.c.l.b16 %v1430
        %v1504 = vunpack.c.h.b16 %v1430
        %v1505 = vunpack.c.l.b16 %v1431
        %v1506 = vunpack.c.h.b16 %v1431
        %v1507 = vunpack.c.l.b16 %v1432
        %v1508 = vunpack.c.h.b16 %v1432
        %v1509 = vunpack.c.l.b16 %v1433
        %v1510 = vunpack.c.h.b16 %v1433
        %v1511 = vunpack.c.l.b16 %v1434
        %v1512 = vunpack.c.h.b16 %v1434
        %v1513 = vunpack.c.l.b16 %v1435
        %v1514 = vunpack.c.h.b16 %v1435
        %v1515 = vunpack.c.l.b16 %v1436
        %v1516 = vunpack.c.h.b16 %v1436
        %v1517 = vunpack.c.l.b16 %v1437
        %v1518 = vunpack.c.h.b16 %v1437
        %v1519 = vunpack.c.l.b16 %v1438
        %v1520 = vunpack.c.h.b16 %v1438
        %v1521 = vunpack.c.l.b16 %v1439
        %v1522 = vunpack.c.h.b16 %v1439
        %v1523 = vunpack.c.l.b16 %v1440
        %v1524 = vunpack.c.h.b16 %v1440
        %v1525 = vunpack.c.l.b16 %v1441
        %v1526 = vunpack.c.h.b16 %v1441
        %v1527 = vunpack.c.l.b16 %v1442
        %v1528 = vunpack.c.h.b16 %v1442
        %v1529 = vunpack.c.l.b16 %v1443
        %v1530 = vunpack.c.h.b16 %v1443
        %v1531 = vunpack.c.l.b16 %v1444
        %v1532 = vunpack.c.h.b16 %v1444
        %v1533 = vunpack.c.l.b16 %v1445
        %v1534 = vunpack.c.h.b16 %v1445
        %v1535 = vunpack.c.l.b16 %v1446
        %v1536 = vunpack.c.h.b16 %v1446
        %v1537 = vunpack.c.l.b16 %v1447
        %v1538 = vunpack.c.h.b16 %v1447
        %v1539 = vunpack.c.l.b16 %v1448
        %v1540 = vunpack.c.h.b16 %v1448
        %v1541 = vunpack.c.l.b16 %v1449
        %v1542 = vunpack.c.h.b16 %v1449
        %v1543 = vunpack.c.l.b16 %v1450
        %v1544 = vunpack.c.h.b16 %v1450
        %v1545 = vunpack.c.l.b16 %v1451
        %v1546 = vunpack.c.h.b16 %v1451
        %v1547 = vunpack.c.l.b16 %v1452
        %v1548 = vunpack.c.h.b16 %v1452
        %v1549 = vpack.c.b16 %v1485, %v1485
        %v1550 = vpack.c.b16 %v1486, %v1486
        %v1551 = vpack.c.b16 %v1487, %v1487
        %v1552 = vpack.c.b16 %v1488, %v1488
        %v1553 = vpack.c.b16 %v1489, %v1489
        %v1554 = vpack.c.b16 %v1490, %v1490
        %v1555 = vpack.c.b16 %v1491, %v1491
        %v1556 = vpack.c.b16 %v1492, %v1492
        %v1557 = vpack.c.b16 %v1493, %v1493
        %v1558 = vpack.c.b16 %v1494, %v1494
        %v1559 = vpack.c.b16 %v1495, %v1495
        %v1560 = vpack.c.b16 %v1496, %v1496
        %v1561 = vpack.c.b16 %v1497, %v1497
        %v1562 = vpack.c.b16 %v1498, %v1498
        %v1563 = vpack.c.b16 %v1499, %v1499
        %v1564 = vpack.c.b16 %v1500, %v1500
        %v1565 = vpack.c.b16 %v1501, %v1501
        %v1566 = vpack.c.b16 %v1502, %v1502
        %v1567 = vpack.c.b16 %v1503, %v1503
        %v1568 = vpack.c.b16 %v1504, %v1504
        %v1569 = vpack.c.b16 %v1505, %v1505
        %v1570 = vpack.c.b16 %v1506, %v1506
        %v1571 = vpack.c.b16 %v1507, %v1507
        %v1572 = vpack.c.b16 %v1508, %v1508
        %v1573 = vpack.c.b16 %v1509, %v1509
        %v1574 = vpack.c.b16 %v1510, %v1510
        %v1575 = vpack.c.b16 %v1511, %v1511
        %v1576 = vpack.c.b16 %v1512, %v1512
        %v1577 = vpack.c.b16 %v1513, %v1513
        %v1578 = vpack.c.b16 %v1514, %v1514
        %v1579 = vpack.c.b16 %v1515, %v1515
        %v1580 = vpack.c.b16 %v1516, %v1516
        %v1581 = vpack.c.b16 %v1517, %v1517
        %v1582 = vpack.c.b16 %v1518, %v1518
        %v1583 = vpack.c.b16 %v1519, %v1519
        %v1584 = vpack.c.b16 %v1520, %v1520
        %v1585 = vpack.c.b16 %v1521, %v1521
        %v1586 = vpack.c.b16 %v1522, %v1522
        %v1587 = vpack.c.b16 %v1523, %v1523
        %v1588 = vpack.c.b16 %v1524, %v1524
        %v1589 = vpack.c.b16 %v1525, %v1525
        %v1590 = vpack.c.b16 %v1526, %v1526
        %v1591 = vpack.c.b16 %v1527, %v1527
        %v1592 = vpack.c.b16 %v1528, %v1528
        %v1593 = vpack.c.b16 %v1529, %v1529
        %v1594 = vpack.c.b16 %v1530, %v1530
        %v1595 = vpack.c.b16 %v1531, %v1531
        %v1596 = vpack.c.b16 %v1532, %v1532
        %v1597 = vpack.c.b16 %v1533, %v1533
        %v1598 = vpack.c.b16 %v1534, %v1534
        %v1599 = vpack.c.b16 %v1535, %v1535
        %v1600 = vpack.c.b16 %v1536, %v1536
        %v1601 = vpack.c.b16 %v1537, %v1537
        %v1602 = vpack.c.b16 %v1538, %v1538
        %v1603 = vpack.c.b16 %v1539, %v1539
        %v1604 = vpack.c.b16 %v1540, %v1540
        %v1605 = vpack.c.b16 %v1541, %v1541
        %v1606 = vpack.c.b16 %v1542, %v1542
        %v1607 = vpack.c.b16 %v1543, %v1543
        %v1608 = vpack.c.b16 %v1544, %v1544
        %v1609 = vpack.c.b16 %v1545, %v1545
        %v1610 = vpack.c.b16 %v1546, %v1546
        %v1611 = vpack.c.b16 %v1547, %v1547
        %v1612 = vpack.c.b16 %v1548, %v1548
        %vm1677 = vcmask 519168
        %1678 = vst.msk [vmem:[%s258] sm:$0xf] %vm1677, %v1549
        %1679 = vst.msk [vmem:[%s258 + $0x4] sm:$0xf] %vm1677, %v1550
        %1680 = vst.msk [vmem:[%s258 + $0x8] sm:$0xf] %vm1677, %v1551
        %1681 = vst.msk [vmem:[%s258 + $0xc] sm:$0xf] %vm1677, %v1552
        %1682 = vst.msk [vmem:[%s258 + $0x10] sm:$0xf] %vm1677, %v1553
        %1683 = vst.msk [vmem:[%s258 + $0x14] sm:$0xf] %vm1677, %v1554
        %1684 = vst.msk [vmem:[%s258 + $0x18] sm:$0xf] %vm1677, %v1555
        %1685 = vst.msk [vmem:[%s258 + $0x1c] sm:$0xf] %vm1677, %v1556
        %1686 = vst.msk [vmem:[%s258 + $0x20] sm:$0xf] %vm1677, %v1557
        %1687 = vst.msk [vmem:[%s258 + $0x24] sm:$0xf] %vm1677, %v1558
        %1688 = vst.msk [vmem:[%s258 + $0x28] sm:$0xf] %vm1677, %v1559
        %1689 = vst.msk [vmem:[%s258 + $0x2c] sm:$0xf] %vm1677, %v1560
        %1690 = vst.msk [vmem:[%s258 + $0x30] sm:$0xf] %vm1677, %v1561
        %1691 = vst.msk [vmem:[%s258 + $0x34] sm:$0xf] %vm1677, %v1562
        %1692 = vst.msk [vmem:[%s258 + $0x38] sm:$0xf] %vm1677, %v1563
        %1693 = vst.msk [vmem:[%s258 + $0x3c] sm:$0xf] %vm1677, %v1564
        %1694 = vst.msk [vmem:[%s258 + $0x40] sm:$0xf] %vm1677, %v1565
        %1695 = vst.msk [vmem:[%s258 + $0x44] sm:$0xf] %vm1677, %v1566
        %1696 = vst.msk [vmem:[%s258 + $0x48] sm:$0xf] %vm1677, %v1567
        %1697 = vst.msk [vmem:[%s258 + $0x4c] sm:$0xf] %vm1677, %v1568
        %1698 = vst.msk [vmem:[%s258 + $0x50] sm:$0xf] %vm1677, %v1569
        %1699 = vst.msk [vmem:[%s258 + $0x54] sm:$0xf] %vm1677, %v1570
        %1700 = vst.msk [vmem:[%s258 + $0x58] sm:$0xf] %vm1677, %v1571
        %1701 = vst.msk [vmem:[%s258 + $0x5c] sm:$0xf] %vm1677, %v1572
        %1702 = vst.msk [vmem:[%s258 + $0x60] sm:$0xf] %vm1677, %v1573
        %1703 = vst.msk [vmem:[%s258 + $0x64] sm:$0xf] %vm1677, %v1574
        %1704 = vst.msk [vmem:[%s258 + $0x68] sm:$0xf] %vm1677, %v1575
        %1705 = vst.msk [vmem:[%s258 + $0x6c] sm:$0xf] %vm1677, %v1576
        %1706 = vst.msk [vmem:[%s258 + $0x70] sm:$0xf] %vm1677, %v1577
        %1707 = vst.msk [vmem:[%s258 + $0x74] sm:$0xf] %vm1677, %v1578
        %1708 = vst.msk [vmem:[%s258 + $0x78] sm:$0xf] %vm1677, %v1579
        %1709 = vst.msk [vmem:[%s258 + $0x7c] sm:$0xf] %vm1677, %v1580
        %1710 = vst.msk [vmem:[%s258 + $0x80] sm:$0xf] %vm1677, %v1581
        %1711 = vst.msk [vmem:[%s258 + $0x84] sm:$0xf] %vm1677, %v1582
        %1712 = vst.msk [vmem:[%s258 + $0x88] sm:$0xf] %vm1677, %v1583
        %1713 = vst.msk [vmem:[%s258 + $0x8c] sm:$0xf] %vm1677, %v1584
        %1714 = vst.msk [vmem:[%s258 + $0x90] sm:$0xf] %vm1677, %v1585
        %1715 = vst.msk [vmem:[%s258 + $0x94] sm:$0xf] %vm1677, %v1586
        %1716 = vst.msk [vmem:[%s258 + $0x98] sm:$0xf] %vm1677, %v1587
        %1717 = vst.msk [vmem:[%s258 + $0x9c] sm:$0xf] %vm1677, %v1588
        %1718 = vst.msk [vmem:[%s258 + $0xa0] sm:$0xf] %vm1677, %v1589
        %1719 = vst.msk [vmem:[%s258 + $0xa4] sm:$0xf] %vm1677, %v1590
        %1720 = vst.msk [vmem:[%s258 + $0xa8] sm:$0xf] %vm1677, %v1591
        %1721 = vst.msk [vmem:[%s258 + $0xac] sm:$0xf] %vm1677, %v1592
        %1722 = vst.msk [vmem:[%s258 + $0xb0] sm:$0xf] %vm1677, %v1593
        %1723 = vst.msk [vmem:[%s258 + $0xb4] sm:$0xf] %vm1677, %v1594
        %1724 = vst.msk [vmem:[%s258 + $0xb8] sm:$0xf] %vm1677, %v1595
        %1725 = vst.msk [vmem:[%s258 + $0xbc] sm:$0xf] %vm1677, %v1596
        %1726 = vst.msk [vmem:[%s258 + $0xc0] sm:$0xf] %vm1677, %v1597
        %1727 = vst.msk [vmem:[%s258 + $0xc4] sm:$0xf] %vm1677, %v1598
        %1728 = vst.msk [vmem:[%s258 + $0xc8] sm:$0xf] %vm1677, %v1599
        %1729 = vst.msk [vmem:[%s258 + $0xcc] sm:$0xf] %vm1677, %v1600
        %1730 = vst.msk [vmem:[%s258 + $0xd0] sm:$0xf] %vm1677, %v1601
        %1731 = vst.msk [vmem:[%s258 + $0xd4] sm:$0xf] %vm1677, %v1602
        %1732 = vst.msk [vmem:[%s258 + $0xd8] sm:$0xf] %vm1677, %v1603
        %1733 = vst.msk [vmem:[%s258 + $0xdc] sm:$0xf] %vm1677, %v1604
        %1734 = vst.msk [vmem:[%s258 + $0xe0] sm:$0xf] %vm1677, %v1605
        %1735 = vst.msk [vmem:[%s258 + $0xe4] sm:$0xf] %vm1677, %v1606
        %1736 = vst.msk [vmem:[%s258 + $0xe8] sm:$0xf] %vm1677, %v1607
        %1737 = vst.msk [vmem:[%s258 + $0xec] sm:$0xf] %vm1677, %v1608
        %1738 = vst.msk [vmem:[%s258 + $0xf0] sm:$0xf] %vm1677, %v1609
        %1739 = vst.msk [vmem:[%s258 + $0xf4] sm:$0xf] %vm1677, %v1610
        %1740 = vst.msk [vmem:[%s258 + $0xf8] sm:$0xf] %vm1677, %v1611
        %1741 = vst.msk [vmem:[%s258 + $0xfc] sm:$0xf] %vm1677, %v1612
      $region40: #{tpu_custom_call.1} parent=31 // pred_fallthru
        _
      %s1742 = smul.u32 64, %s20
      %p1743 = scmp.lt.s32.totalorder %s1742, 255
      %s1744 = scalar_select %p1743, %s1742, 255
      %s1745 = smul.addr %s1744, 8
      %s1746 = scalar_lea.vmem %s3, %s1745
      %s1747 = smul.u32 64, %s20
      %p1748 = scmp.lt.s32.totalorder %s1747, 255
      %s1749 = scalar_select %p1748, %s1747, 255
      %s1750 = smul.addr %s1749, 4
      %s1751 = scalar_lea.vmem %s4, %s1750
      // Predicated region
      $region41: #{tpu_custom_call.1} parent=31 // pred_check
        %p1752 = pneg %p121
      $region42: #{tpu_custom_call.1} parent=31 // pred_check_branch
        %1754 = sbr.rel (%p1752) target = $region44
      $region43: #{tpu_custom_call.1} parent=31 // pred_region
        %s1755 = smul.u32 64, %s20
      $region44: #{tpu_custom_call.1} parent=31 // pred_fallthru
        _
      // Predicated region
      $region45: #{tpu_custom_call.1} parent=31 // pred_check
        %p1756 = pneg %p147
      $region46: #{tpu_custom_call.1} parent=31 // pred_check_branch
        %1758 = sbr.rel (%p1756) target = $region48
      $region47: #{tpu_custom_call.1} parent=31 // pred_region
        %s1759 = smul.u32 64, %s20
      $region48: #{tpu_custom_call.1} parent=31 // pred_fallthru
        _
    $region32: #{tpu_custom_call.1} parent=5 // pred_fallthru
      _
    %p1760 = scmp.le.s32.totalorder 2, %s11
    // Predicated region
    $region49: #{tpu_custom_call.1} parent=5 // pred_check
      %p1761 = pneg %p1760
    $region50: #{tpu_custom_call.1} parent=5 // pred_check_branch
      %1763 = sbr.rel (%p1761) target = $region52
    $region51: #{tpu_custom_call.1} parent=5 // pred_region
      %s1764 = ssub.s32 %s11, 2
      // Predicated region
      $region53: #{tpu_custom_call.1} parent=51 // pred_check
        %p1765 = pneg %p127
      $region54: #{tpu_custom_call.1} parent=51 // pred_check_branch
        %1767 = sbr.rel (%p1765) target = $region56
      $region55: #{tpu_custom_call.1} parent=51 // pred_region
        %s1768 = smul.u32 64, %s22
        %p1769 = scmp.lt.s32.totalorder %s1768, 255
        %s1770 = scalar_select %p1769, %s1768, 255
        %s1771 = smul.addr %s1770, 8
        %s1772 = scalar_lea.vmem %s3, %s1771
      $region56: #{tpu_custom_call.1} parent=51 // pred_fallthru
        _
      // Predicated region
      $region57: #{tpu_custom_call.1} parent=51 // pred_check
        %p1773 = pneg %p153
      $region58: #{tpu_custom_call.1} parent=51 // pred_check_branch
        %1775 = sbr.rel (%p1773) target = $region60
      $region59: #{tpu_custom_call.1} parent=51 // pred_region
        %s1776 = smul.u32 64, %s22
        %p1777 = scmp.lt.s32.totalorder %s1776, 255
        %s1778 = scalar_select %p1777, %s1776, 255
        %s1779 = smul.addr %s1778, 4
        %s1780 = scalar_lea.vmem %s4, %s1779
      $region60: #{tpu_custom_call.1} parent=51 // pred_fallthru
        _
    $region52: #{tpu_custom_call.1} parent=5 // pred_fallthru
      _
  $region6: #{tpu_custom_call.1} parent=0 // loop_footer
    %s15 = sadd.s32 1, %s11
  $region7: #{tpu_custom_call.1} parent=0 // loop_footer_branch
    %10 = sbr.rel target = $region3
  $region8: #{tpu_custom_call.1} parent=0 // loop_exit
    _

</llo_original>
